<compile_context>
chip_gen: v7x
topology: tpu7x:2x2x1
jax: 0.10.0
libtpu: 0.0.40
codegen_flags: <defaults>
</compile_context>

<pallas_src>
import functools

import jax
import jax.numpy as jnp
from jax.experimental import pallas as pl
from jax.experimental.pallas import tpu as pltpu


def _attention_kernel(x_ref, bias_ref, wqkv_ref, wp_ref, bp_ref, o_ref, ctx_ref,
                      *, num_heads):
    # x_ref    : (TB, Np, C)  activations (already MXU dtype)
    # bias_ref : (TB, 1, Np)  additive key-mask bias (0 keep / -1e30 masked), f32
    # wqkv_ref : (3, C, C)    q/k/v projection weights (q pre-scaled), resident
    # wp_ref   : (C, C)       output-projection weight, resident
    # bp_ref   : (1, C)       output-projection bias, f32
    # o_ref    : (TB, Np, C)  output block
    # ctx_ref  : (TB*Np, C)   scratch: per-head attention outputs (MXU dtype)
    tb, n, c = x_ref.shape
    hd = c // num_heads
    cdt = wqkv_ref.dtype  # MXU operand dtype (bf16 by default)

    xf = x_ref[...].reshape(tb * n, c)  # merge leading dims only (lane dim intact)

    # Full-width projections: lane width C, contraction C -> MXU dense, f32 accum.
    q = jnp.dot(xf, wqkv_ref[0], preferred_element_type=jnp.float32)  # (TB*Np, C)
    k = jnp.dot(xf, wqkv_ref[1], preferred_element_type=jnp.float32)
    v = jnp.dot(xf, wqkv_ref[2], preferred_element_type=jnp.float32)

    q3 = q.reshape(tb, n, c).astype(cdt)  # leading-dim split only (safe reshape)
    k3 = k.reshape(tb, n, c).astype(cdt)
    v3 = v.reshape(tb, n, c).astype(cdt)
    bias = bias_ref[...]                  # (TB, 1, Np), f32

    # Per-head attention core (static unroll; softmax math stays f32).
    for h in range(num_heads):
        lo = h * hd
        qh = q3[:, :, lo:lo + hd]         # (TB, Np, hd)
        kh = k3[:, :, lo:lo + hd]
        vh = v3[:, :, lo:lo + hd]
        s = jnp.einsum("bqd,bkd->bqk", qh, kh,
                       preferred_element_type=jnp.float32)            # (TB, Np, Np)
        s = s + bias
        m = jnp.max(s, axis=-1, keepdims=True)
        e = jnp.exp(s - m)
        p = e * pl.reciprocal(jnp.sum(e, axis=-1, keepdims=True), approx=True)
        oh = jnp.einsum("bqk,bkd->bqd", p.astype(cdt), vh,
                        preferred_element_type=jnp.float32)           # (TB, Np, hd)
        ctx_ref[:, lo:lo + hd] = oh.reshape(tb * n, hd).astype(ctx_ref.dtype)

    # Single full-K output projection (no per-head accumulator read-modify-write).
    out = jnp.dot(ctx_ref[...], wp_ref[...],
                  preferred_element_type=jnp.float32) + bp_ref[...]
    o_ref[...] = out.reshape(tb, n, c).astype(o_ref.dtype)


def _pick_tb(batch, rows_per_b, max_rows=1024):
    """Batch elements per grid step: big row blocks, keep >=2 steps when possible."""
    cands = [tb for tb in range(1, batch + 1)
             if batch % tb == 0 and tb * rows_per_b <= max_rows]
    if not cands:
        return 1
    multi = [tb for tb in cands if batch // tb >= 2]  # >=2 steps -> v7x dual-TC
    return max(multi) if multi else max(cands)


def attention(x, mask, wqkv, wp, bp, *, num_heads, tb=None,
              mxu_dtype=jnp.bfloat16, pad_multiple=8):
    """x: (B, N, C), mask: (B, N) of {0,1}. Returns (B, N, C)."""
    B, N, C = x.shape
    assert C % num_heads == 0, "dim must be divisible by num_heads"
    hd = C // num_heads
    scale = hd ** (-0.5)

    # Pad token axis to a sublane-friendly size; padded keys are masked via the
    # additive bias, padded query rows are sliced off after the call.
    n_pad = ((N + pad_multiple - 1) // pad_multiple) * pad_multiple
    if n_pad != N:
        x = jnp.pad(x, ((0, 0), (0, n_pad - N), (0, 0)))
        mask = jnp.pad(mask, ((0, 0), (0, n_pad - N)))  # 0 => masked out

    if tb is None:
        tb = _pick_tb(B, n_pad)
    assert B % tb == 0

    w_dtype = jnp.float32 if mxu_dtype is None else mxu_dtype
    # wqkv columns are ordered (qkv, head, head_dim); fold the q scale here.
    wq = (wqkv[:, :C] * scale).astype(w_dtype)
    wk = wqkv[:, C:2 * C].astype(w_dtype)
    wv = wqkv[:, 2 * C:].astype(w_dtype)
    wqkv3 = jnp.stack([wq, wk, wv], axis=0)               # (3, C, C)
    wp_c = wp.astype(w_dtype)                              # (C, C)
    bp2 = bp.reshape(1, C).astype(jnp.float32)
    x_in = x if mxu_dtype is None else x.astype(mxu_dtype)

    # Additive attention bias: 0 for kept keys, -1e30 for masked keys.
    attn_bias = ((mask.astype(jnp.float32) - 1.0) * 1e30).reshape(B, 1, n_pad)

    kernel = functools.partial(_attention_kernel, num_heads=num_heads)

    out = pl.pallas_call(
        kernel,
        out_shape=jax.ShapeDtypeStruct((B, n_pad, C), x.dtype),
        grid_spec=pltpu.PrefetchScalarGridSpec(
            num_scalar_prefetch=0,
            grid=(B // tb,),
            in_specs=[
                pl.BlockSpec((tb, n_pad, C), lambda b: (b, 0, 0)),   # x tile
                pl.BlockSpec((tb, 1, n_pad), lambda b: (b, 0, 0)),   # mask bias tile
                pl.BlockSpec((3, C, C), lambda b: (0, 0, 0)),        # qkv W (resident)
                pl.BlockSpec((C, C), lambda b: (0, 0)),              # proj W (resident)
                pl.BlockSpec((1, C), lambda b: (0, 0)),              # proj b (resident)
            ],
            out_specs=pl.BlockSpec((tb, n_pad, C), lambda b: (b, 0, 0)),
            scratch_shapes=[pltpu.VMEM((tb * n_pad, C), w_dtype)],
        ),
        compiler_params=pltpu.CompilerParams(
            dimension_semantics=("parallel",),
            vmem_limit_bytes=48 * 1024 * 1024,   # fits v7x's 64 MiB/TC budget
        ),
    )(x_in, attn_bias, wqkv3, wp_c, bp2)

    return out[:, :N, :] if n_pad != N else out


def _reference(x, mask, wqkv, wp, bp, *, num_heads):
    """Pure-JAX (f32) mirror of the PyTorch Attention.forward."""
    B, N, C = x.shape
    hd = C // num_heads
    scale = hd ** (-0.5)

    qkv = (x @ wqkv).reshape(B, N, 3, num_heads, hd).transpose(2, 0, 3, 1, 4)
    q, k, v = qkv[0], qkv[1], qkv[2]
    q = q * scale
    attn = jnp.einsum("bhqd,bhkd->bhqk", q, k)
    m = mask.reshape(B, 1, 1, N)
    attn = jnp.where(m == 0, -jnp.inf, attn)
    attn = jax.nn.softmax(attn, axis=-1)
    out = jnp.einsum("bhqk,bhkd->bhqd", attn, v).transpose(0, 2, 1, 3).reshape(B, N, C)
    return out @ wp + bp.reshape(1, 1, C)


if __name__ == "__main__":
    B, N, C = 2, 8, 32
    num_heads = 8   # head_dim = 4

    key = jax.random.PRNGKey(0)
    kx, kw, kp, kb, km = jax.random.split(key, 5)

    x = jax.random.normal(kx, (B, N, C), dtype=jnp.float32)

    # "Linear" parameters stored as (in, out) = torch_weight.T; qkv has no bias.
    wqkv = jax.random.normal(kw, (C, 3 * C), dtype=jnp.float32) * 0.05
    wp = jax.random.normal(kp, (C, C), dtype=jnp.float32) * 0.05
    bp = jax.random.normal(kb, (C,), dtype=jnp.float32) * 0.05

    # Random {0,1} key mask; keep key 0 visible so no row is fully masked
    # (fully-masked rows give NaN in the PyTorch reference as well).
    mask = jax.random.bernoulli(km, p=0.7, shape=(B, N)).astype(jnp.float32)
    mask = mask.at[:, 0].set(1.0)

    out = attention(x, mask, wqkv, wp, bp, num_heads=num_heads)
    out = jax.block_until_ready(out)

    ref = _reference(x, mask, wqkv, wp, bp, num_heads=num_heads)
    assert out.shape == (B, N, C)
    # Tolerance covers bf16 MXU operands and the EUP approximate reciprocal.
    assert jnp.allclose(out, ref, atol=1e-2, rtol=1e-2), "mismatch vs reference"

    print("KERNEL_OK")
</pallas_src>

<mosaic_0001>
module attributes {stable_mosaic.version = 11 : i64} {
  func.func @_attention_kernel(%arg0: i32, %arg1: memref<1x8x32xbf16, #tpu.memory_space<vmem>>, %arg2: memref<1x1x8xf32, #tpu.memory_space<vmem>>, %arg3: memref<3x32x32xbf16, #tpu.memory_space<vmem>>, %arg4: memref<32x32xbf16, #tpu.memory_space<vmem>>, %arg5: memref<1x32xf32, #tpu.memory_space<vmem>>, %arg6: memref<1x8x32xf32, #tpu.memory_space<vmem>>, %arg7: memref<8x32xbf16, #tpu.memory_space<vmem>>) attributes {dimension_semantics = [#tpu.dimension_semantics<parallel>], iteration_bounds = array<i64: 2>, scalar_prefetch = 0 : i64, scratch_operands = 1 : i64, tpu.core_type = #tpu.core_type<tc>, window_params = [{transform_indices = @transform_0, window_bounds = array<i64: 1, 8, 32>}, {transform_indices = @transform_1, window_bounds = array<i64: 1, 1, 8>}, {pipeline_mode = #tpu.pipeline_mode<synchronous>, transform_indices = @transform_2, window_bounds = array<i64: 3, 32, 32>}, {pipeline_mode = #tpu.pipeline_mode<synchronous>, transform_indices = @transform_3, window_bounds = array<i64: 32, 32>}, {pipeline_mode = #tpu.pipeline_mode<synchronous>, transform_indices = @transform_4, window_bounds = array<i64: 1, 32>}, {transform_indices = @transform_5, window_bounds = array<i64: 1, 8, 32>}]} {
    %c0 = arith.constant 0 : index
    %c0_0 = arith.constant 0 : index
    %c0_1 = arith.constant 0 : index
    %0 = vector.load %arg1[%c0, %c0_0, %c0_1] : memref<1x8x32xbf16, #tpu.memory_space<vmem>>, vector<1x8x32xbf16>
    %1 = vector.shape_cast %0 : vector<1x8x32xbf16> to vector<8x32xbf16>
    %c0_2 = arith.constant 0 : index
    %c0_3 = arith.constant 0 : index
    %c0_4 = arith.constant 0 : index
    %2 = vector.load %arg3[%c0_2, %c0_3, %c0_4] : memref<3x32x32xbf16, #tpu.memory_space<vmem>>, vector<1x32x32xbf16>
    %3 = vector.shape_cast %2 : vector<1x32x32xbf16> to vector<32x32xbf16>
    %cst = arith.constant dense<0.000000e+00> : vector<8x32xf32>
    %4 = tpu.matmul %1, %3, %cst {dimension_numbers = #tpu.dot_dimension_numbers<[1], [0], [0], [1], [0, 0, 1, 1], [], []>} : vector<8x32xbf16>, vector<32x32xbf16>, vector<8x32xf32> -> vector<8x32xf32>
    %c1 = arith.constant 1 : index
    %c0_5 = arith.constant 0 : index
    %c0_6 = arith.constant 0 : index
    %5 = vector.load %arg3[%c1, %c0_5, %c0_6] : memref<3x32x32xbf16, #tpu.memory_space<vmem>>, vector<1x32x32xbf16>
    %6 = vector.shape_cast %5 : vector<1x32x32xbf16> to vector<32x32xbf16>
    %cst_7 = arith.constant dense<0.000000e+00> : vector<8x32xf32>
    %7 = tpu.matmul %1, %6, %cst_7 {dimension_numbers = #tpu.dot_dimension_numbers<[1], [0], [0], [1], [0, 0, 1, 1], [], []>} : vector<8x32xbf16>, vector<32x32xbf16>, vector<8x32xf32> -> vector<8x32xf32>
    %c2 = arith.constant 2 : index
    %c0_8 = arith.constant 0 : index
    %c0_9 = arith.constant 0 : index
    %8 = vector.load %arg3[%c2, %c0_8, %c0_9] : memref<3x32x32xbf16, #tpu.memory_space<vmem>>, vector<1x32x32xbf16>
    %9 = vector.shape_cast %8 : vector<1x32x32xbf16> to vector<32x32xbf16>
    %cst_10 = arith.constant dense<0.000000e+00> : vector<8x32xf32>
    %10 = tpu.matmul %1, %9, %cst_10 {dimension_numbers = #tpu.dot_dimension_numbers<[1], [0], [0], [1], [0, 0, 1, 1], [], []>} : vector<8x32xbf16>, vector<32x32xbf16>, vector<8x32xf32> -> vector<8x32xf32>
    %11 = vector.shape_cast %4 : vector<8x32xf32> to vector<1x8x32xf32>
    %12 = arith.truncf %11 : vector<1x8x32xf32> to vector<1x8x32xbf16>
    %13 = vector.shape_cast %7 : vector<8x32xf32> to vector<1x8x32xf32>
    %14 = arith.truncf %13 : vector<1x8x32xf32> to vector<1x8x32xbf16>
    %15 = vector.shape_cast %10 : vector<8x32xf32> to vector<1x8x32xf32>
    %16 = arith.truncf %15 : vector<1x8x32xf32> to vector<1x8x32xbf16>
    %c0_11 = arith.constant 0 : index
    %c0_12 = arith.constant 0 : index
    %c0_13 = arith.constant 0 : index
    %17 = vector.load %arg2[%c0_11, %c0_12, %c0_13] : memref<1x1x8xf32, #tpu.memory_space<vmem>>, vector<1x1x8xf32>
    %18 = vector.extract_strided_slice %12 {offsets = [0, 0, 0], sizes = [1, 8, 4], strides = [1, 1, 1]} : vector<1x8x32xbf16> to vector<1x8x4xbf16>
    %19 = vector.extract_strided_slice %14 {offsets = [0, 0, 0], sizes = [1, 8, 4], strides = [1, 1, 1]} : vector<1x8x32xbf16> to vector<1x8x4xbf16>
    %20 = vector.extract_strided_slice %16 {offsets = [0, 0, 0], sizes = [1, 8, 4], strides = [1, 1, 1]} : vector<1x8x32xbf16> to vector<1x8x4xbf16>
    "tpu.trace_start"() <{level = 10 : i32, message = "bqd,bkd->bqk"}> : () -> ()
    %cst_14 = arith.constant dense<0.000000e+00> : vector<1x8x8xf32>
    %21 = tpu.matmul %18, %19, %cst_14 {dimension_numbers = #tpu.dot_dimension_numbers<[2], [2], [1], [1], [0, 0, 0, 1, 1, 1], [0], [0]>} : vector<1x8x4xbf16>, vector<1x8x4xbf16>, vector<1x8x8xf32> -> vector<1x8x8xf32>
    "tpu.trace_stop"() : () -> ()
    %22 = vector.broadcast %17 : vector<1x1x8xf32> to vector<1x8x8xf32>
    %23 = arith.addf %21, %22 : vector<1x8x8xf32>
    %cst_15 = arith.constant dense<0xFF800000> : vector<1x8xf32>
    %24 = vector.multi_reduction <maximumf>, %23, %cst_15 [2] : vector<1x8x8xf32> to vector<1x8xf32>
    %25 = vector.shape_cast %24 : vector<1x8xf32> to vector<1x8x1xf32>
    %26 = vector.broadcast %25 : vector<1x8x1xf32> to vector<1x8x8xf32>
    %27 = arith.subf %23, %26 : vector<1x8x8xf32>
    %28 = math.exp %27 : vector<1x8x8xf32>
    %cst_16 = arith.constant dense<0.000000e+00> : vector<1x8xf32>
    %29 = vector.multi_reduction <add>, %28, %cst_16 [2] : vector<1x8x8xf32> to vector<1x8xf32>
    %30 = vector.shape_cast %29 : vector<1x8xf32> to vector<1x8x1xf32>
    %31 = tpu.reciprocal %30 {approx = true} : vector<1x8x1xf32> -> vector<1x8x1xf32>
    %32 = vector.broadcast %31 : vector<1x8x1xf32> to vector<1x8x8xf32>
    %33 = arith.mulf %28, %32 : vector<1x8x8xf32>
    %34 = arith.truncf %33 : vector<1x8x8xf32> to vector<1x8x8xbf16>
    "tpu.trace_start"() <{level = 10 : i32, message = "bqk,bkd->bqd"}> : () -> ()
    %cst_17 = arith.constant dense<0.000000e+00> : vector<1x8x4xf32>
    %35 = tpu.matmul %34, %20, %cst_17 {dimension_numbers = #tpu.dot_dimension_numbers<[2], [1], [1], [2], [0, 0, 0, 1, 1, 2], [0], [0]>} : vector<1x8x8xbf16>, vector<1x8x4xbf16>, vector<1x8x4xf32> -> vector<1x8x4xf32>
    "tpu.trace_stop"() : () -> ()
    %36 = vector.shape_cast %35 : vector<1x8x4xf32> to vector<8x4xf32>
    %37 = arith.truncf %36 : vector<8x4xf32> to vector<8x4xbf16>
    %c0_18 = arith.constant 0 : index
    %c0_19 = arith.constant 0 : index
    %38 = vector.load %arg7[%c0_18, %c0_19] : memref<8x32xbf16, #tpu.memory_space<vmem>>, vector<8x4xbf16>
    tpu.vector_store %arg7[%c0_18, %c0_19], %37 {strides = array<i32>} : memref<8x32xbf16, #tpu.memory_space<vmem>>, vector<8x4xbf16>,
    %39 = vector.extract_strided_slice %12 {offsets = [0, 0, 4], sizes = [1, 8, 4], strides = [1, 1, 1]} : vector<1x8x32xbf16> to vector<1x8x4xbf16>
    %40 = vector.extract_strided_slice %14 {offsets = [0, 0, 4], sizes = [1, 8, 4], strides = [1, 1, 1]} : vector<1x8x32xbf16> to vector<1x8x4xbf16>
    %41 = vector.extract_strided_slice %16 {offsets = [0, 0, 4], sizes = [1, 8, 4], strides = [1, 1, 1]} : vector<1x8x32xbf16> to vector<1x8x4xbf16>
    "tpu.trace_start"() <{level = 10 : i32, message = "bqd,bkd->bqk"}> : () -> ()
    %cst_20 = arith.constant dense<0.000000e+00> : vector<1x8x8xf32>
    %42 = tpu.matmul %39, %40, %cst_20 {dimension_numbers = #tpu.dot_dimension_numbers<[2], [2], [1], [1], [0, 0, 0, 1, 1, 1], [0], [0]>} : vector<1x8x4xbf16>, vector<1x8x4xbf16>, vector<1x8x8xf32> -> vector<1x8x8xf32>
    "tpu.trace_stop"() : () -> ()
    %43 = vector.broadcast %17 : vector<1x1x8xf32> to vector<1x8x8xf32>
    %44 = arith.addf %42, %43 : vector<1x8x8xf32>
    %cst_21 = arith.constant dense<0xFF800000> : vector<1x8xf32>
    %45 = vector.multi_reduction <maximumf>, %44, %cst_21 [2] : vector<1x8x8xf32> to vector<1x8xf32>
    %46 = vector.shape_cast %45 : vector<1x8xf32> to vector<1x8x1xf32>
    %47 = vector.broadcast %46 : vector<1x8x1xf32> to vector<1x8x8xf32>
    %48 = arith.subf %44, %47 : vector<1x8x8xf32>
    %49 = math.exp %48 : vector<1x8x8xf32>
    %cst_22 = arith.constant dense<0.000000e+00> : vector<1x8xf32>
    %50 = vector.multi_reduction <add>, %49, %cst_22 [2] : vector<1x8x8xf32> to vector<1x8xf32>
    %51 = vector.shape_cast %50 : vector<1x8xf32> to vector<1x8x1xf32>
    %52 = tpu.reciprocal %51 {approx = true} : vector<1x8x1xf32> -> vector<1x8x1xf32>
    %53 = vector.broadcast %52 : vector<1x8x1xf32> to vector<1x8x8xf32>
    %54 = arith.mulf %49, %53 : vector<1x8x8xf32>
    %55 = arith.truncf %54 : vector<1x8x8xf32> to vector<1x8x8xbf16>
    "tpu.trace_start"() <{level = 10 : i32, message = "bqk,bkd->bqd"}> : () -> ()
    %cst_23 = arith.constant dense<0.000000e+00> : vector<1x8x4xf32>
    %56 = tpu.matmul %55, %41, %cst_23 {dimension_numbers = #tpu.dot_dimension_numbers<[2], [1], [1], [2], [0, 0, 0, 1, 1, 2], [0], [0]>} : vector<1x8x8xbf16>, vector<1x8x4xbf16>, vector<1x8x4xf32> -> vector<1x8x4xf32>
    "tpu.trace_stop"() : () -> ()
    %57 = vector.shape_cast %56 : vector<1x8x4xf32> to vector<8x4xf32>
    %58 = arith.truncf %57 : vector<8x4xf32> to vector<8x4xbf16>
    %c0_24 = arith.constant 0 : index
    %c4 = arith.constant 4 : index
    %59 = vector.load %arg7[%c0_24, %c4] : memref<8x32xbf16, #tpu.memory_space<vmem>>, vector<8x4xbf16>
    tpu.vector_store %arg7[%c0_24, %c4], %58 {strides = array<i32>} : memref<8x32xbf16, #tpu.memory_space<vmem>>, vector<8x4xbf16>,
    %60 = vector.extract_strided_slice %12 {offsets = [0, 0, 8], sizes = [1, 8, 4], strides = [1, 1, 1]} : vector<1x8x32xbf16> to vector<1x8x4xbf16>
    %61 = vector.extract_strided_slice %14 {offsets = [0, 0, 8], sizes = [1, 8, 4], strides = [1, 1, 1]} : vector<1x8x32xbf16> to vector<1x8x4xbf16>
    %62 = vector.extract_strided_slice %16 {offsets = [0, 0, 8], sizes = [1, 8, 4], strides = [1, 1, 1]} : vector<1x8x32xbf16> to vector<1x8x4xbf16>
    "tpu.trace_start"() <{level = 10 : i32, message = "bqd,bkd->bqk"}> : () -> ()
    %cst_25 = arith.constant dense<0.000000e+00> : vector<1x8x8xf32>
    %63 = tpu.matmul %60, %61, %cst_25 {dimension_numbers = #tpu.dot_dimension_numbers<[2], [2], [1], [1], [0, 0, 0, 1, 1, 1], [0], [0]>} : vector<1x8x4xbf16>, vector<1x8x4xbf16>, vector<1x8x8xf32> -> vector<1x8x8xf32>
    "tpu.trace_stop"() : () -> ()
    %64 = vector.broadcast %17 : vector<1x1x8xf32> to vector<1x8x8xf32>
    %65 = arith.addf %63, %64 : vector<1x8x8xf32>
    %cst_26 = arith.constant dense<0xFF800000> : vector<1x8xf32>
    %66 = vector.multi_reduction <maximumf>, %65, %cst_26 [2] : vector<1x8x8xf32> to vector<1x8xf32>
    %67 = vector.shape_cast %66 : vector<1x8xf32> to vector<1x8x1xf32>
    %68 = vector.broadcast %67 : vector<1x8x1xf32> to vector<1x8x8xf32>
    %69 = arith.subf %65, %68 : vector<1x8x8xf32>
    %70 = math.exp %69 : vector<1x8x8xf32>
    %cst_27 = arith.constant dense<0.000000e+00> : vector<1x8xf32>
    %71 = vector.multi_reduction <add>, %70, %cst_27 [2] : vector<1x8x8xf32> to vector<1x8xf32>
    %72 = vector.shape_cast %71 : vector<1x8xf32> to vector<1x8x1xf32>
    %73 = tpu.reciprocal %72 {approx = true} : vector<1x8x1xf32> -> vector<1x8x1xf32>
    %74 = vector.broadcast %73 : vector<1x8x1xf32> to vector<1x8x8xf32>
    %75 = arith.mulf %70, %74 : vector<1x8x8xf32>
    %76 = arith.truncf %75 : vector<1x8x8xf32> to vector<1x8x8xbf16>
    "tpu.trace_start"() <{level = 10 : i32, message = "bqk,bkd->bqd"}> : () -> ()
    %cst_28 = arith.constant dense<0.000000e+00> : vector<1x8x4xf32>
    %77 = tpu.matmul %76, %62, %cst_28 {dimension_numbers = #tpu.dot_dimension_numbers<[2], [1], [1], [2], [0, 0, 0, 1, 1, 2], [0], [0]>} : vector<1x8x8xbf16>, vector<1x8x4xbf16>, vector<1x8x4xf32> -> vector<1x8x4xf32>
    "tpu.trace_stop"() : () -> ()
    %78 = vector.shape_cast %77 : vector<1x8x4xf32> to vector<8x4xf32>
    %79 = arith.truncf %78 : vector<8x4xf32> to vector<8x4xbf16>
    %c0_29 = arith.constant 0 : index
    %c8 = arith.constant 8 : index
    %80 = vector.load %arg7[%c0_29, %c8] : memref<8x32xbf16, #tpu.memory_space<vmem>>, vector<8x4xbf16>
    tpu.vector_store %arg7[%c0_29, %c8], %79 {strides = array<i32>} : memref<8x32xbf16, #tpu.memory_space<vmem>>, vector<8x4xbf16>,
    %81 = vector.extract_strided_slice %12 {offsets = [0, 0, 12], sizes = [1, 8, 4], strides = [1, 1, 1]} : vector<1x8x32xbf16> to vector<1x8x4xbf16>
    %82 = vector.extract_strided_slice %14 {offsets = [0, 0, 12], sizes = [1, 8, 4], strides = [1, 1, 1]} : vector<1x8x32xbf16> to vector<1x8x4xbf16>
    %83 = vector.extract_strided_slice %16 {offsets = [0, 0, 12], sizes = [1, 8, 4], strides = [1, 1, 1]} : vector<1x8x32xbf16> to vector<1x8x4xbf16>
    "tpu.trace_start"() <{level = 10 : i32, message = "bqd,bkd->bqk"}> : () -> ()
    %cst_30 = arith.constant dense<0.000000e+00> : vector<1x8x8xf32>
    %84 = tpu.matmul %81, %82, %cst_30 {dimension_numbers = #tpu.dot_dimension_numbers<[2], [2], [1], [1], [0, 0, 0, 1, 1, 1], [0], [0]>} : vector<1x8x4xbf16>, vector<1x8x4xbf16>, vector<1x8x8xf32> -> vector<1x8x8xf32>
    "tpu.trace_stop"() : () -> ()
    %85 = vector.broadcast %17 : vector<1x1x8xf32> to vector<1x8x8xf32>
    %86 = arith.addf %84, %85 : vector<1x8x8xf32>
    %cst_31 = arith.constant dense<0xFF800000> : vector<1x8xf32>
    %87 = vector.multi_reduction <maximumf>, %86, %cst_31 [2] : vector<1x8x8xf32> to vector<1x8xf32>
    %88 = vector.shape_cast %87 : vector<1x8xf32> to vector<1x8x1xf32>
    %89 = vector.broadcast %88 : vector<1x8x1xf32> to vector<1x8x8xf32>
    %90 = arith.subf %86, %89 : vector<1x8x8xf32>
    %91 = math.exp %90 : vector<1x8x8xf32>
    %cst_32 = arith.constant dense<0.000000e+00> : vector<1x8xf32>
    %92 = vector.multi_reduction <add>, %91, %cst_32 [2] : vector<1x8x8xf32> to vector<1x8xf32>
    %93 = vector.shape_cast %92 : vector<1x8xf32> to vector<1x8x1xf32>
    %94 = tpu.reciprocal %93 {approx = true} : vector<1x8x1xf32> -> vector<1x8x1xf32>
    %95 = vector.broadcast %94 : vector<1x8x1xf32> to vector<1x8x8xf32>
    %96 = arith.mulf %91, %95 : vector<1x8x8xf32>
    %97 = arith.truncf %96 : vector<1x8x8xf32> to vector<1x8x8xbf16>
    "tpu.trace_start"() <{level = 10 : i32, message = "bqk,bkd->bqd"}> : () -> ()
    %cst_33 = arith.constant dense<0.000000e+00> : vector<1x8x4xf32>
    %98 = tpu.matmul %97, %83, %cst_33 {dimension_numbers = #tpu.dot_dimension_numbers<[2], [1], [1], [2], [0, 0, 0, 1, 1, 2], [0], [0]>} : vector<1x8x8xbf16>, vector<1x8x4xbf16>, vector<1x8x4xf32> -> vector<1x8x4xf32>
    "tpu.trace_stop"() : () -> ()
    %99 = vector.shape_cast %98 : vector<1x8x4xf32> to vector<8x4xf32>
    %100 = arith.truncf %99 : vector<8x4xf32> to vector<8x4xbf16>
    %c0_34 = arith.constant 0 : index
    %c12 = arith.constant 12 : index
    %101 = vector.load %arg7[%c0_34, %c12] : memref<8x32xbf16, #tpu.memory_space<vmem>>, vector<8x4xbf16>
    tpu.vector_store %arg7[%c0_34, %c12], %100 {strides = array<i32>} : memref<8x32xbf16, #tpu.memory_space<vmem>>, vector<8x4xbf16>,
    %102 = vector.extract_strided_slice %12 {offsets = [0, 0, 16], sizes = [1, 8, 4], strides = [1, 1, 1]} : vector<1x8x32xbf16> to vector<1x8x4xbf16>
    %103 = vector.extract_strided_slice %14 {offsets = [0, 0, 16], sizes = [1, 8, 4], strides = [1, 1, 1]} : vector<1x8x32xbf16> to vector<1x8x4xbf16>
    %104 = vector.extract_strided_slice %16 {offsets = [0, 0, 16], sizes = [1, 8, 4], strides = [1, 1, 1]} : vector<1x8x32xbf16> to vector<1x8x4xbf16>
    "tpu.trace_start"() <{level = 10 : i32, message = "bqd,bkd->bqk"}> : () -> ()
    %cst_35 = arith.constant dense<0.000000e+00> : vector<1x8x8xf32>
    %105 = tpu.matmul %102, %103, %cst_35 {dimension_numbers = #tpu.dot_dimension_numbers<[2], [2], [1], [1], [0, 0, 0, 1, 1, 1], [0], [0]>} : vector<1x8x4xbf16>, vector<1x8x4xbf16>, vector<1x8x8xf32> -> vector<1x8x8xf32>
    "tpu.trace_stop"() : () -> ()
    %106 = vector.broadcast %17 : vector<1x1x8xf32> to vector<1x8x8xf32>
    %107 = arith.addf %105, %106 : vector<1x8x8xf32>
    %cst_36 = arith.constant dense<0xFF800000> : vector<1x8xf32>
    %108 = vector.multi_reduction <maximumf>, %107, %cst_36 [2] : vector<1x8x8xf32> to vector<1x8xf32>
    %109 = vector.shape_cast %108 : vector<1x8xf32> to vector<1x8x1xf32>
    %110 = vector.broadcast %109 : vector<1x8x1xf32> to vector<1x8x8xf32>
    %111 = arith.subf %107, %110 : vector<1x8x8xf32>
    %112 = math.exp %111 : vector<1x8x8xf32>
    %cst_37 = arith.constant dense<0.000000e+00> : vector<1x8xf32>
    %113 = vector.multi_reduction <add>, %112, %cst_37 [2] : vector<1x8x8xf32> to vector<1x8xf32>
    %114 = vector.shape_cast %113 : vector<1x8xf32> to vector<1x8x1xf32>
    %115 = tpu.reciprocal %114 {approx = true} : vector<1x8x1xf32> -> vector<1x8x1xf32>
    %116 = vector.broadcast %115 : vector<1x8x1xf32> to vector<1x8x8xf32>
    %117 = arith.mulf %112, %116 : vector<1x8x8xf32>
    %118 = arith.truncf %117 : vector<1x8x8xf32> to vector<1x8x8xbf16>
    "tpu.trace_start"() <{level = 10 : i32, message = "bqk,bkd->bqd"}> : () -> ()
    %cst_38 = arith.constant dense<0.000000e+00> : vector<1x8x4xf32>
    %119 = tpu.matmul %118, %104, %cst_38 {dimension_numbers = #tpu.dot_dimension_numbers<[2], [1], [1], [2], [0, 0, 0, 1, 1, 2], [0], [0]>} : vector<1x8x8xbf16>, vector<1x8x4xbf16>, vector<1x8x4xf32> -> vector<1x8x4xf32>
    "tpu.trace_stop"() : () -> ()
    %120 = vector.shape_cast %119 : vector<1x8x4xf32> to vector<8x4xf32>
    %121 = arith.truncf %120 : vector<8x4xf32> to vector<8x4xbf16>
    %c0_39 = arith.constant 0 : index
    %c16 = arith.constant 16 : index
    %122 = vector.load %arg7[%c0_39, %c16] : memref<8x32xbf16, #tpu.memory_space<vmem>>, vector<8x4xbf16>
    tpu.vector_store %arg7[%c0_39, %c16], %121 {strides = array<i32>} : memref<8x32xbf16, #tpu.memory_space<vmem>>, vector<8x4xbf16>,
    %123 = vector.extract_strided_slice %12 {offsets = [0, 0, 20], sizes = [1, 8, 4], strides = [1, 1, 1]} : vector<1x8x32xbf16> to vector<1x8x4xbf16>
    %124 = vector.extract_strided_slice %14 {offsets = [0, 0, 20], sizes = [1, 8, 4], strides = [1, 1, 1]} : vector<1x8x32xbf16> to vector<1x8x4xbf16>
    %125 = vector.extract_strided_slice %16 {offsets = [0, 0, 20], sizes = [1, 8, 4], strides = [1, 1, 1]} : vector<1x8x32xbf16> to vector<1x8x4xbf16>
    "tpu.trace_start"() <{level = 10 : i32, message = "bqd,bkd->bqk"}> : () -> ()
    %cst_40 = arith.constant dense<0.000000e+00> : vector<1x8x8xf32>
    %126 = tpu.matmul %123, %124, %cst_40 {dimension_numbers = #tpu.dot_dimension_numbers<[2], [2], [1], [1], [0, 0, 0, 1, 1, 1], [0], [0]>} : vector<1x8x4xbf16>, vector<1x8x4xbf16>, vector<1x8x8xf32> -> vector<1x8x8xf32>
    "tpu.trace_stop"() : () -> ()
    %127 = vector.broadcast %17 : vector<1x1x8xf32> to vector<1x8x8xf32>
    %128 = arith.addf %126, %127 : vector<1x8x8xf32>
    %cst_41 = arith.constant dense<0xFF800000> : vector<1x8xf32>
    %129 = vector.multi_reduction <maximumf>, %128, %cst_41 [2] : vector<1x8x8xf32> to vector<1x8xf32>
    %130 = vector.shape_cast %129 : vector<1x8xf32> to vector<1x8x1xf32>
    %131 = vector.broadcast %130 : vector<1x8x1xf32> to vector<1x8x8xf32>
    %132 = arith.subf %128, %131 : vector<1x8x8xf32>
    %133 = math.exp %132 : vector<1x8x8xf32>
    %cst_42 = arith.constant dense<0.000000e+00> : vector<1x8xf32>
    %134 = vector.multi_reduction <add>, %133, %cst_42 [2] : vector<1x8x8xf32> to vector<1x8xf32>
    %135 = vector.shape_cast %134 : vector<1x8xf32> to vector<1x8x1xf32>
    %136 = tpu.reciprocal %135 {approx = true} : vector<1x8x1xf32> -> vector<1x8x1xf32>
    %137 = vector.broadcast %136 : vector<1x8x1xf32> to vector<1x8x8xf32>
    %138 = arith.mulf %133, %137 : vector<1x8x8xf32>
    %139 = arith.truncf %138 : vector<1x8x8xf32> to vector<1x8x8xbf16>
    "tpu.trace_start"() <{level = 10 : i32, message = "bqk,bkd->bqd"}> : () -> ()
    %cst_43 = arith.constant dense<0.000000e+00> : vector<1x8x4xf32>
    %140 = tpu.matmul %139, %125, %cst_43 {dimension_numbers = #tpu.dot_dimension_numbers<[2], [1], [1], [2], [0, 0, 0, 1, 1, 2], [0], [0]>} : vector<1x8x8xbf16>, vector<1x8x4xbf16>, vector<1x8x4xf32> -> vector<1x8x4xf32>
    "tpu.trace_stop"() : () -> ()
    %141 = vector.shape_cast %140 : vector<1x8x4xf32> to vector<8x4xf32>
    %142 = arith.truncf %141 : vector<8x4xf32> to vector<8x4xbf16>
    %c0_44 = arith.constant 0 : index
    %c20 = arith.constant 20 : index
    %143 = vector.load %arg7[%c0_44, %c20] : memref<8x32xbf16, #tpu.memory_space<vmem>>, vector<8x4xbf16>
    tpu.vector_store %arg7[%c0_44, %c20], %142 {strides = array<i32>} : memref<8x32xbf16, #tpu.memory_space<vmem>>, vector<8x4xbf16>,
    %144 = vector.extract_strided_slice %12 {offsets = [0, 0, 24], sizes = [1, 8, 4], strides = [1, 1, 1]} : vector<1x8x32xbf16> to vector<1x8x4xbf16>
    %145 = vector.extract_strided_slice %14 {offsets = [0, 0, 24], sizes = [1, 8, 4], strides = [1, 1, 1]} : vector<1x8x32xbf16> to vector<1x8x4xbf16>
    %146 = vector.extract_strided_slice %16 {offsets = [0, 0, 24], sizes = [1, 8, 4], strides = [1, 1, 1]} : vector<1x8x32xbf16> to vector<1x8x4xbf16>
    "tpu.trace_start"() <{level = 10 : i32, message = "bqd,bkd->bqk"}> : () -> ()
    %cst_45 = arith.constant dense<0.000000e+00> : vector<1x8x8xf32>
    %147 = tpu.matmul %144, %145, %cst_45 {dimension_numbers = #tpu.dot_dimension_numbers<[2], [2], [1], [1], [0, 0, 0, 1, 1, 1], [0], [0]>} : vector<1x8x4xbf16>, vector<1x8x4xbf16>, vector<1x8x8xf32> -> vector<1x8x8xf32>
    "tpu.trace_stop"() : () -> ()
    %148 = vector.broadcast %17 : vector<1x1x8xf32> to vector<1x8x8xf32>
    %149 = arith.addf %147, %148 : vector<1x8x8xf32>
    %cst_46 = arith.constant dense<0xFF800000> : vector<1x8xf32>
    %150 = vector.multi_reduction <maximumf>, %149, %cst_46 [2] : vector<1x8x8xf32> to vector<1x8xf32>
    %151 = vector.shape_cast %150 : vector<1x8xf32> to vector<1x8x1xf32>
    %152 = vector.broadcast %151 : vector<1x8x1xf32> to vector<1x8x8xf32>
    %153 = arith.subf %149, %152 : vector<1x8x8xf32>
    %154 = math.exp %153 : vector<1x8x8xf32>
    %cst_47 = arith.constant dense<0.000000e+00> : vector<1x8xf32>
    %155 = vector.multi_reduction <add>, %154, %cst_47 [2] : vector<1x8x8xf32> to vector<1x8xf32>
    %156 = vector.shape_cast %155 : vector<1x8xf32> to vector<1x8x1xf32>
    %157 = tpu.reciprocal %156 {approx = true} : vector<1x8x1xf32> -> vector<1x8x1xf32>
    %158 = vector.broadcast %157 : vector<1x8x1xf32> to vector<1x8x8xf32>
    %159 = arith.mulf %154, %158 : vector<1x8x8xf32>
    %160 = arith.truncf %159 : vector<1x8x8xf32> to vector<1x8x8xbf16>
    "tpu.trace_start"() <{level = 10 : i32, message = "bqk,bkd->bqd"}> : () -> ()
    %cst_48 = arith.constant dense<0.000000e+00> : vector<1x8x4xf32>
    %161 = tpu.matmul %160, %146, %cst_48 {dimension_numbers = #tpu.dot_dimension_numbers<[2], [1], [1], [2], [0, 0, 0, 1, 1, 2], [0], [0]>} : vector<1x8x8xbf16>, vector<1x8x4xbf16>, vector<1x8x4xf32> -> vector<1x8x4xf32>
    "tpu.trace_stop"() : () -> ()
    %162 = vector.shape_cast %161 : vector<1x8x4xf32> to vector<8x4xf32>
    %163 = arith.truncf %162 : vector<8x4xf32> to vector<8x4xbf16>
    %c0_49 = arith.constant 0 : index
    %c24 = arith.constant 24 : index
    %164 = vector.load %arg7[%c0_49, %c24] : memref<8x32xbf16, #tpu.memory_space<vmem>>, vector<8x4xbf16>
    tpu.vector_store %arg7[%c0_49, %c24], %163 {strides = array<i32>} : memref<8x32xbf16, #tpu.memory_space<vmem>>, vector<8x4xbf16>,
    %165 = vector.extract_strided_slice %12 {offsets = [0, 0, 28], sizes = [1, 8, 4], strides = [1, 1, 1]} : vector<1x8x32xbf16> to vector<1x8x4xbf16>
    %166 = vector.extract_strided_slice %14 {offsets = [0, 0, 28], sizes = [1, 8, 4], strides = [1, 1, 1]} : vector<1x8x32xbf16> to vector<1x8x4xbf16>
    %167 = vector.extract_strided_slice %16 {offsets = [0, 0, 28], sizes = [1, 8, 4], strides = [1, 1, 1]} : vector<1x8x32xbf16> to vector<1x8x4xbf16>
    "tpu.trace_start"() <{level = 10 : i32, message = "bqd,bkd->bqk"}> : () -> ()
    %cst_50 = arith.constant dense<0.000000e+00> : vector<1x8x8xf32>
    %168 = tpu.matmul %165, %166, %cst_50 {dimension_numbers = #tpu.dot_dimension_numbers<[2], [2], [1], [1], [0, 0, 0, 1, 1, 1], [0], [0]>} : vector<1x8x4xbf16>, vector<1x8x4xbf16>, vector<1x8x8xf32> -> vector<1x8x8xf32>
    "tpu.trace_stop"() : () -> ()
    %169 = vector.broadcast %17 : vector<1x1x8xf32> to vector<1x8x8xf32>
    %170 = arith.addf %168, %169 : vector<1x8x8xf32>
    %cst_51 = arith.constant dense<0xFF800000> : vector<1x8xf32>
    %171 = vector.multi_reduction <maximumf>, %170, %cst_51 [2] : vector<1x8x8xf32> to vector<1x8xf32>
    %172 = vector.shape_cast %171 : vector<1x8xf32> to vector<1x8x1xf32>
    %173 = vector.broadcast %172 : vector<1x8x1xf32> to vector<1x8x8xf32>
    %174 = arith.subf %170, %173 : vector<1x8x8xf32>
    %175 = math.exp %174 : vector<1x8x8xf32>
    %cst_52 = arith.constant dense<0.000000e+00> : vector<1x8xf32>
    %176 = vector.multi_reduction <add>, %175, %cst_52 [2] : vector<1x8x8xf32> to vector<1x8xf32>
    %177 = vector.shape_cast %176 : vector<1x8xf32> to vector<1x8x1xf32>
    %178 = tpu.reciprocal %177 {approx = true} : vector<1x8x1xf32> -> vector<1x8x1xf32>
    %179 = vector.broadcast %178 : vector<1x8x1xf32> to vector<1x8x8xf32>
    %180 = arith.mulf %175, %179 : vector<1x8x8xf32>
    %181 = arith.truncf %180 : vector<1x8x8xf32> to vector<1x8x8xbf16>
    "tpu.trace_start"() <{level = 10 : i32, message = "bqk,bkd->bqd"}> : () -> ()
    %cst_53 = arith.constant dense<0.000000e+00> : vector<1x8x4xf32>
    %182 = tpu.matmul %181, %167, %cst_53 {dimension_numbers = #tpu.dot_dimension_numbers<[2], [1], [1], [2], [0, 0, 0, 1, 1, 2], [0], [0]>} : vector<1x8x8xbf16>, vector<1x8x4xbf16>, vector<1x8x4xf32> -> vector<1x8x4xf32>
    "tpu.trace_stop"() : () -> ()
    %183 = vector.shape_cast %182 : vector<1x8x4xf32> to vector<8x4xf32>
    %184 = arith.truncf %183 : vector<8x4xf32> to vector<8x4xbf16>
    %c0_54 = arith.constant 0 : index
    %c28 = arith.constant 28 : index
    %185 = vector.load %arg7[%c0_54, %c28] : memref<8x32xbf16, #tpu.memory_space<vmem>>, vector<8x4xbf16>
    tpu.vector_store %arg7[%c0_54, %c28], %184 {strides = array<i32>} : memref<8x32xbf16, #tpu.memory_space<vmem>>, vector<8x4xbf16>,
    %c0_55 = arith.constant 0 : index
    %c0_56 = arith.constant 0 : index
    %186 = vector.load %arg7[%c0_55, %c0_56] : memref<8x32xbf16, #tpu.memory_space<vmem>>, vector<8x32xbf16>
    %c0_57 = arith.constant 0 : index
    %c0_58 = arith.constant 0 : index
    %187 = vector.load %arg4[%c0_57, %c0_58] : memref<32x32xbf16, #tpu.memory_space<vmem>>, vector<32x32xbf16>
    %cst_59 = arith.constant dense<0.000000e+00> : vector<8x32xf32>
    %188 = tpu.matmul %186, %187, %cst_59 {dimension_numbers = #tpu.dot_dimension_numbers<[1], [0], [0], [1], [0, 0, 1, 1], [], []>} : vector<8x32xbf16>, vector<32x32xbf16>, vector<8x32xf32> -> vector<8x32xf32>
    %c0_60 = arith.constant 0 : index
    %c0_61 = arith.constant 0 : index
    %189 = vector.load %arg5[%c0_60, %c0_61] : memref<1x32xf32, #tpu.memory_space<vmem>>, vector<1x32xf32>
    %190 = vector.broadcast %189 : vector<1x32xf32> to vector<8x32xf32>
    %191 = arith.addf %188, %190 : vector<8x32xf32>
    %192 = vector.shape_cast %191 : vector<8x32xf32> to vector<1x8x32xf32>
    %c0_62 = arith.constant 0 : index
    %c0_63 = arith.constant 0 : index
    %c0_64 = arith.constant 0 : index
    %193 = vector.load %arg6[%c0_62, %c0_63, %c0_64] : memref<1x8x32xf32, #tpu.memory_space<vmem>>, vector<1x8x32xf32>
    tpu.vector_store %arg6[%c0_62, %c0_63, %c0_64], %192 {strides = array<i32>} : memref<1x8x32xf32, #tpu.memory_space<vmem>>, vector<1x8x32xf32>,
    return
  }
  func.func @transform_0(%arg0: i32) -> (i32, i32, i32) {
    %c0_i32 = arith.constant 0 : i32
    %c0_i32_0 = arith.constant 0 : i32
    %c0_i32_1 = arith.constant 0 : i32
    return %arg0, %c0_i32, %c0_i32_0 : i32, i32, i32
  }
  func.func @transform_1(%arg0: i32) -> (i32, i32, i32) {
    %c0_i32 = arith.constant 0 : i32
    %c0_i32_0 = arith.constant 0 : i32
    %c0_i32_1 = arith.constant 0 : i32
    return %arg0, %c0_i32, %c0_i32_0 : i32, i32, i32
  }
  func.func @transform_2(%arg0: i32) -> (i32, i32, i32) {
    %c0_i32 = arith.constant 0 : i32
    %c0_i32_0 = arith.constant 0 : i32
    %c0_i32_1 = arith.constant 0 : i32
    %c0_i32_2 = arith.constant 0 : i32
    return %c0_i32, %c0_i32_0, %c0_i32_1 : i32, i32, i32
  }
  func.func @transform_3(%arg0: i32) -> (i32, i32) {
    %c0_i32 = arith.constant 0 : i32
    %c0_i32_0 = arith.constant 0 : i32
    %c0_i32_1 = arith.constant 0 : i32
    return %c0_i32, %c0_i32_0 : i32, i32
  }
  func.func @transform_4(%arg0: i32) -> (i32, i32) {
    %c0_i32 = arith.constant 0 : i32
    %c0_i32_0 = arith.constant 0 : i32
    %c0_i32_1 = arith.constant 0 : i32
    return %c0_i32, %c0_i32_0 : i32, i32
  }
  func.func @transform_5(%arg0: i32) -> (i32, i32, i32) {
    %c0_i32 = arith.constant 0 : i32
    %c0_i32_0 = arith.constant 0 : i32
    %c0_i32_1 = arith.constant 0 : i32
    return %arg0, %c0_i32, %c0_i32_0 : i32, i32, i32
  }
}

</mosaic_0001>

<llo_original>
// kernel: tpu_custom_call.1
$region0: #{tpu_custom_call.1}
  #allocation0 [shape = 'u32[]', space=smem, size = 0x4, offset = 0x4, fixed_abs, tag = 'smem constant byte address 0x4 - core index']
  #allocation1 [shape = 'u32[144,128]{1,0:T(1,128)}', space=vmem, size = 0x12000, scoped, tag = 'internal scratch']
  #allocation2 [shape = 'bf16[8,32]{1,0:T(8,128)(2,1)}', space=vmem, size = 0x800, scoped, tag = 'scratch operand']
  %s0 = inlined_call_operand.hbm [shape: bf16[2,8,32], index: 0, kind: input, shape index: {}]
  %s1 = inlined_call_operand.vmem [shape: f32[2,1,8], index: 1, kind: input, shape index: {}]
  %s2 = inlined_call_operand.hbm [shape: bf16[3,32,32], index: 2, kind: input, shape index: {}]
  %s3 = inlined_call_operand.hbm [shape: bf16[32,32], index: 3, kind: input, shape index: {}]
  %s4 = inlined_call_operand.vmem [shape: f32[1,32], index: 4, kind: input, shape index: {}]
  %s5 = inlined_call_operand.hbm [shape: f32[2,8,32], index: 5, kind: output, shape index: {}]
  %s6 = sld [smem:[#allocation0]]
  $region65: #{tpu_custom_call.1} parent=0
    _
  %s8 = ssub.s32 1, %s6
  %s9 = scalar_select 0, %s8, %s6
  $region1: #{tpu_custom_call.1} parent=0
    #allocation3 [shape = 'u8[4096]{0}', space=vmem, size = 0x1000, scoped, tag = 'input window, operand 0']
    #allocation4 [shape = 's32[2]{0}', space=sflag, size = 0x8, scoped, tag = 'scoped memory for tpu_custom_call.1']
    #allocation5 [shape = 's32[2]{0}', space=sflag, size = 0x8, scoped, tag = 'scoped memory for tpu_custom_call.1']
    #allocation6 [shape = 'u8[24576]{0}', space=vmem, size = 0x6000, scoped, tag = 'input window, operand 2, single buffered']
    #allocation7 [shape = 's32[1]{0}', space=sflag, size = 0x4, scoped, tag = 'scoped memory for tpu_custom_call.1']
    #allocation8 [shape = 'u8[8192]{0}', space=vmem, size = 0x2000, scoped, tag = 'input window, operand 3, single buffered']
    #allocation9 [shape = 'u8[8192]{0}', space=vmem, size = 0x2000, scoped, tag = 'output window, operand 0']
    %10 = vsyncpa [#allocation4], 0
    %s11 = scalar_lea.sflag [#allocation4], 1
    %12 = vsyncpa %s11, 0
    %13 = vsyncpa [#allocation7], 0
    %14 = vsyncpa [#allocation5], 0
    %s15 = scalar_lea.sflag [#allocation5], 1
    %16 = vsyncpa %s15, 0
    loop: start=0, step=1, limit=4
    $region2: #{tpu_custom_call.1} parent=1 // loop_pre_header
      _
    $region3: #{tpu_custom_call.1} parent=1 // loop_header
      %s18 = sphi 0, %s22
      %p19 = scmp.ge.s32.totalorder %s18, 4
      %s28 = sphi 0, %s30
      %s31 = sphi 0, %s28
      %s32 = sphi 0, %s31
      %s48 = sphi 0, %s32
      %s54 = sphi 0, %s56
      %s57 = sphi 0, %s54
      %s58 = sphi 0, %s57
      %s74 = sphi 0, %s58
      %s78 = sphi 0, %s78
      %s80 = sphi 0, %s78
      %s81 = sphi 0, %s80
      %s95 = sphi 0, %s81
      %s99 = sphi 0, %s99
      %s101 = sphi 0, %s99
      %s102 = sphi 0, %s101
      %s116 = sphi 0, %s102
      %s120 = sphi 0, %s120
      %s122 = sphi 0, %s120
      %s123 = sphi 0, %s122
      %s137 = sphi 0, %s123
      %s143 = sphi 0, %s145
      %s146 = sphi 0, %s143
      %s147 = sphi 0, %s146
      %s163 = sphi 0, %s147
    $region4: #{tpu_custom_call.1} parent=1 // loop_header_branch
      %21 = sbr.rel (%p19) target = $region8
    $region5: #{tpu_custom_call.1} parent=1 // loop_body
      %s23 = ssub.s32 %s18, 1
      %s24 = ssub.s32 %s18, 2
      %s25 = sadd.s32 %s18, 1
      %s26 = ssub.s32 %s18, %s25
      %p27 = scmp.eq.s32.totalorder %s26, 0
      %s29 = sadd.s32 %s28, 1
      %s30 = scalar_select %p27, %s28, %s29
      %p33 = pneg %p27
      %p34 = scmp.eq.s32.totalorder %s18, 1
      %p35 = por %p33, %p34
      %p36 = scmp.ne.s32.totalorder %s28, %s31
      %p37 = scmp.eq.s32.totalorder %s18, 0
      %p38 = por %p36, %p37
      %p39 = scmp.ne.s32.totalorder %s28, %s31
      %p40 = scmp.eq.s32.totalorder %s23, 1
      %p41 = por %p39, %p40
      %p42 = scmp.ne.s32.totalorder %s31, %s32
      %p43 = scmp.eq.s32.totalorder %s23, 0
      %p44 = por %p42, %p43
      %p45 = scmp.ne.s32.totalorder %s31, %s32
      %p46 = scmp.eq.s32.totalorder %s24, 1
      %p47 = por %p45, %p46
      %p49 = scmp.ne.s32.totalorder %s32, %s48
      %p50 = scmp.eq.s32.totalorder %s24, 0
      %p51 = por %p49, %p50
      %s52 = ssub.s32 %s18, %s25
      %p53 = scmp.eq.s32.totalorder %s52, 0
      %s55 = sadd.s32 %s54, 1
      %s56 = scalar_select %p53, %s54, %s55
      %p59 = pneg %p53
      %p60 = scmp.eq.s32.totalorder %s18, 1
      %p61 = por %p59, %p60
      %p62 = scmp.ne.s32.totalorder %s54, %s57
      %p63 = scmp.eq.s32.totalorder %s18, 0
      %p64 = por %p62, %p63
      %p65 = scmp.ne.s32.totalorder %s54, %s57
      %p66 = scmp.eq.s32.totalorder %s23, 1
      %p67 = por %p65, %p66
      %p68 = scmp.ne.s32.totalorder %s57, %s58
      %p69 = scmp.eq.s32.totalorder %s23, 0
      %p70 = por %p68, %p69
      %p71 = scmp.ne.s32.totalorder %s57, %s58
      %p72 = scmp.eq.s32.totalorder %s24, 1
      %p73 = por %p71, %p72
      %p75 = scmp.ne.s32.totalorder %s58, %s74
      %p76 = scmp.eq.s32.totalorder %s24, 0
      %p77 = por %p75, %p76
      %s79 = sadd.s32 %s78, 1
      %p82 = scmp.eq.s32.totalorder %s18, 1
      %p83 = scmp.ne.s32.totalorder %s78, %s80
      %p84 = scmp.eq.s32.totalorder %s18, 0
      %p85 = por %p83, %p84
      %p86 = scmp.ne.s32.totalorder %s78, %s80
      %p87 = scmp.eq.s32.totalorder %s23, 1
      %p88 = por %p86, %p87
      %p89 = scmp.ne.s32.totalorder %s80, %s81
      %p90 = scmp.eq.s32.totalorder %s23, 0
      %p91 = por %p89, %p90
      %p92 = scmp.ne.s32.totalorder %s80, %s81
      %p93 = scmp.eq.s32.totalorder %s24, 1
      %p94 = por %p92, %p93
      %p96 = scmp.ne.s32.totalorder %s81, %s95
      %p97 = scmp.eq.s32.totalorder %s24, 0
      %p98 = por %p96, %p97
      %s100 = sadd.s32 %s99, 1
      %p103 = scmp.eq.s32.totalorder %s18, 1
      %p104 = scmp.ne.s32.totalorder %s99, %s101
      %p105 = scmp.eq.s32.totalorder %s18, 0
      %p106 = por %p104, %p105
      %p107 = scmp.ne.s32.totalorder %s99, %s101
      %p108 = scmp.eq.s32.totalorder %s23, 1
      %p109 = por %p107, %p108
      %p110 = scmp.ne.s32.totalorder %s101, %s102
      %p111 = scmp.eq.s32.totalorder %s23, 0
      %p112 = por %p110, %p111
      %p113 = scmp.ne.s32.totalorder %s101, %s102
      %p114 = scmp.eq.s32.totalorder %s24, 1
      %p115 = por %p113, %p114
      %p117 = scmp.ne.s32.totalorder %s102, %s116
      %p118 = scmp.eq.s32.totalorder %s24, 0
      %p119 = por %p117, %p118
      %s121 = sadd.s32 %s120, 1
      %p124 = scmp.eq.s32.totalorder %s18, 1
      %p125 = scmp.ne.s32.totalorder %s120, %s122
      %p126 = scmp.eq.s32.totalorder %s18, 0
      %p127 = por %p125, %p126
      %p128 = scmp.ne.s32.totalorder %s120, %s122
      %p129 = scmp.eq.s32.totalorder %s23, 1
      %p130 = por %p128, %p129
      %p131 = scmp.ne.s32.totalorder %s122, %s123
      %p132 = scmp.eq.s32.totalorder %s23, 0
      %p133 = por %p131, %p132
      %p134 = scmp.ne.s32.totalorder %s122, %s123
      %p135 = scmp.eq.s32.totalorder %s24, 1
      %p136 = por %p134, %p135
      %p138 = scmp.ne.s32.totalorder %s123, %s137
      %p139 = scmp.eq.s32.totalorder %s24, 0
      %p140 = por %p138, %p139
      %s141 = ssub.s32 %s18, %s25
      %p142 = scmp.eq.s32.totalorder %s141, 0
      %s144 = sadd.s32 %s143, 1
      %s145 = scalar_select %p142, %s143, %s144
      %p148 = pneg %p142
      %p149 = scmp.eq.s32.totalorder %s18, 1
      %p150 = por %p148, %p149
      %p151 = scmp.ne.s32.totalorder %s143, %s146
      %p152 = scmp.eq.s32.totalorder %s18, 0
      %p153 = por %p151, %p152
      %p154 = scmp.ne.s32.totalorder %s143, %s146
      %p155 = scmp.eq.s32.totalorder %s23, 1
      %p156 = por %p154, %p155
      %p157 = scmp.ne.s32.totalorder %s146, %s147
      %p158 = scmp.eq.s32.totalorder %s23, 0
      %p159 = por %p157, %p158
      %p160 = scmp.ne.s32.totalorder %s146, %s147
      %p161 = scmp.eq.s32.totalorder %s24, 1
      %p162 = por %p160, %p161
      %p164 = scmp.ne.s32.totalorder %s147, %s163
      %p165 = scmp.eq.s32.totalorder %s24, 0
      %p166 = por %p164, %p165
      %p167 = scmp.le.s32.totalorder 1, %s18
      %p168 = scmp.lt.s32.totalorder %s18, 3
      %p169 = pnand %p167, %p168
      %p170 = pneg %p169
      // Predicated region
      $region9: #{tpu_custom_call.1} parent=5 // pred_check
        _
      $region10: #{tpu_custom_call.1} parent=5 // pred_check_branch
        %172 = sbr.rel (%p169) target = $region12
      $region11: #{tpu_custom_call.1} parent=5 // pred_region
        %s173 = ssub.s32 %s18, 1
        // Predicated region
        $region13: #{tpu_custom_call.1} parent=11 // pred_check
          %p174 = pneg %p91
        $region14: #{tpu_custom_call.1} parent=11 // pred_check_branch
          %176 = sbr.rel (%p174) target = $region16
        $region15: #{tpu_custom_call.1} parent=11 // pred_region
          %s178 = ssub.s32 768, 768
          %179 = vsyncadd [#allocation7], %s178
          %s180 = sshll.u32 [#allocation6], 4
          %s181 = int_to_ptr.vmem [resolvable:$true] %s180
          %186 = dma.hbm_to_vmem [thread:$0]  %s2, 768, %s181, [#allocation7], 64, 64, 4
        $region16: #{tpu_custom_call.1} parent=11 // pred_fallthru
          _
        // Predicated region
        $region17: #{tpu_custom_call.1} parent=11 // pred_check
          %p187 = pneg %p112
        $region18: #{tpu_custom_call.1} parent=11 // pred_check_branch
          %189 = sbr.rel (%p187) target = $region20
        $region19: #{tpu_custom_call.1} parent=11 // pred_region
          %s191 = ssub.s32 256, 256
          %192 = vsyncadd [#allocation7], %s191
          %s193 = sshll.u32 [#allocation8], 4
          %s194 = int_to_ptr.vmem [resolvable:$true] %s193
          %199 = dma.hbm_to_vmem [thread:$0]  %s3, 256, %s194, [#allocation7], 64, 64, 4
        $region20: #{tpu_custom_call.1} parent=11 // pred_fallthru
          _
        // Predicated region
        $region21: #{tpu_custom_call.1} parent=11 // pred_check
          %p200 = pneg %p133
        $region22: #{tpu_custom_call.1} parent=11 // pred_check_branch
          %202 = sbr.rel (%p200) target = $region24
        $region23: #{tpu_custom_call.1} parent=11 // pred_region
          _
        $region24: #{tpu_custom_call.1} parent=11 // pred_fallthru
          _
      $region12: #{tpu_custom_call.1} parent=5 // pred_fallthru
        _
      %p203 = scmp.lt.s32.totalorder %s18, 2
      // Predicated region
      $region25: #{tpu_custom_call.1} parent=5 // pred_check
        %p204 = pneg %p203
      $region26: #{tpu_custom_call.1} parent=5 // pred_check_branch
        %206 = sbr.rel (%p204) target = $region28
      $region27: #{tpu_custom_call.1} parent=5 // pred_region
        // Predicated region
        $region29: #{tpu_custom_call.1} parent=27 // pred_check
          %p207 = pneg %p38
        $region30: #{tpu_custom_call.1} parent=27 // pred_check_branch
          %209 = sbr.rel (%p207) target = $region32
        $region31: #{tpu_custom_call.1} parent=27 // pred_region
          %s210 = sand.u32 %s28, 1
          %s211 = scalar_lea.sflag [#allocation4], %s210
          %s212 = sand.u32 %s28, 1
          %s213 = smul.addr %s212, 4
          %s214 = scalar_lea.vmem [#allocation3], %s213
          %s216 = ssub.s32 64, 64
          %217 = vsyncadd %s211, %s216
          %s218 = smul.addr %s18, 64
          %s219 = scalar_lea.hbm %s0, %s218
          %s221 = sshll.u32 %s214, 4
          %s222 = int_to_ptr.vmem [resolvable:$true] %s221
          %224 = dma.hbm_to_vmem [thread:$0]  %s219, 64, %s222, %s211
        $region32: #{tpu_custom_call.1} parent=27 // pred_fallthru
          _
        // Predicated region
        $region33: #{tpu_custom_call.1} parent=27 // pred_check
          %p225 = pneg %p64
        $region34: #{tpu_custom_call.1} parent=27 // pred_check_branch
          %227 = sbr.rel (%p225) target = $region36
        $region35: #{tpu_custom_call.1} parent=27 // pred_region
          %p228 = scmp.lt.s32.totalorder %s18, 1
          %s229 = scalar_select %p228, %s18, 1
          %s230 = scalar_lea.vmem %s1, %s229
        $region36: #{tpu_custom_call.1} parent=27 // pred_fallthru
          _
      $region28: #{tpu_custom_call.1} parent=5 // pred_fallthru
        _
      %p231 = scmp.le.s32.totalorder 1, %s18
      %p232 = scmp.lt.s32.totalorder %s18, 3
      %p233 = pnand %p231, %p232
      %p234 = pneg %p233
      // Predicated region
      $region37: #{tpu_custom_call.1} parent=5 // pred_check
        _
      $region38: #{tpu_custom_call.1} parent=5 // pred_check_branch
        %236 = sbr.rel (%p233) target = $region40
      $region39: #{tpu_custom_call.1} parent=5 // pred_region
        %s237 = ssub.s32 %s18, 1
        %s238 = sand.u32 %s31, 1
        %s239 = scalar_lea.sflag [#allocation4], %s238
        %s240 = sand.u32 %s31, 1
        %s241 = smul.addr %s240, 4
        %s242 = scalar_lea.vmem [#allocation3], %s241
        // Predicated region
        $region41: #{tpu_custom_call.1} parent=39 // pred_check
          %p243 = pneg %p44
        $region42: #{tpu_custom_call.1} parent=39 // pred_check_branch
          %245 = sbr.rel (%p243) target = $region44
        $region43: #{tpu_custom_call.1} parent=39 // pred_region
          %246 = dma.done %s239, 64
        $region44: #{tpu_custom_call.1} parent=39 // pred_fallthru
          _
        // Predicated region
        $region45: #{tpu_custom_call.1} parent=39 // pred_check
          %p247 = pneg %p91
        $region46: #{tpu_custom_call.1} parent=39 // pred_check_branch
          %249 = sbr.rel (%p247) target = $region48
        $region47: #{tpu_custom_call.1} parent=39 // pred_region
          %250 = dma.done [#allocation7], 768
        $region48: #{tpu_custom_call.1} parent=39 // pred_fallthru
          _
        // Predicated region
        $region49: #{tpu_custom_call.1} parent=39 // pred_check
          %p251 = pneg %p112
        $region50: #{tpu_custom_call.1} parent=39 // pred_check_branch
          %253 = sbr.rel (%p251) target = $region52
        $region51: #{tpu_custom_call.1} parent=39 // pred_region
          %254 = dma.done [#allocation7], 256
        $region52: #{tpu_custom_call.1} parent=39 // pred_fallthru
          _
        %s255 = sand.u32 %s31, 1
        %s256 = scalar_lea.sflag [#allocation4], %s255
        %s257 = sand.u32 %s31, 1
        %s258 = smul.addr %s257, 4
        %s259 = scalar_lea.vmem [#allocation3], %s258
        %p260 = pneg %p44
        %p261 = pneg %p41
        %p262 = scmp.lt.s32.totalorder %s23, 1
        %s263 = scalar_select %p262, %s23, 1
        %s264 = scalar_lea.vmem %s1, %s263
        %p265 = pneg %p70
        %p266 = pneg %p67
        %p267 = pneg %p91
        %p268 = pneg %p88
        %p269 = pneg %p112
        %p270 = pneg %p109
        %p271 = pneg %p133
        %p272 = pneg %p130
        %p273 = pneg %p159
        %p274 = pneg %p156
        %s275 = sand.u32 %s146, 1
        %s276 = scalar_lea.sflag [#allocation5], %s275
        %s277 = sand.u32 %s146, 1
        %s278 = smul.addr %s277, 8
        %s279 = scalar_lea.vmem [#allocation9], %s278
        %p280 = scmp.lt.s32.totalorder %s23, 1
        %s281 = scalar_select %p280, %s23, 1
        %s282 = scalar_lea.vmem %s1, %s281
        %v284 = vld [vmem:[%s242] sm:$0xf]
        %v285 = vld [vmem:[#allocation6] sm:$0xf]
        %v286 = vld [vmem:[#allocation6 + $0x4] sm:$0xf]
        %v287 = vld [vmem:[#allocation6 + $0x8] sm:$0xf]
        %v288 = vld [vmem:[#allocation6 + $0xc] sm:$0xf]
        %v293 = vunpack.c.l.b16 %v285
        %v294 = vunpack.c.l.b16 %v286
        %v295 = vunpack.c.l.b16 %v287
        %v296 = vunpack.c.l.b16 %v288
        %v297 = vpack.c.b16 %v294, %v293
        %v298 = vpack.c.b16 %v296, %v295
        %vm301 = vcmask 261120
        %v303 = vsel %vm301, %v284, 0
        %305 = vmatprep.subr.bf16.mxu0 0
        %306 = vmatpush1.bf16.msra.mxu0 %v297
        %307 = vmatprep.subr.bf16.mxu0 0
        %308 = vmatpush1.bf16.msra.mxu0 %v298
        %309 = vmatprep.subr.bf16.mxu0 0
        %310 = vmatpush1.bf16.msra.mxu0 0
        %311 = vmatprep.subr.bf16.mxu0 0
        %312 = vmatpush1.bf16.msra.mxu0 0
        %313 = vmatprep.subr.bf16.mxu0 0
        %314 = vmatpush1.bf16.msra.mxu0 0
        %315 = vmatprep.subr.bf16.mxu0 0
        %316 = vmatpush1.bf16.msra.mxu0 0
        %317 = vmatprep.subr.bf16.mxu0 0
        %318 = vmatpush1.bf16.msra.mxu0 0
        %319 = vmatprep.subr.bf16.mxu0 0
        %320 = vmatpush1.bf16.msra.mxu0 0
        %321 = vmatprep.subr.bf16.mxu0 0
        %322 = vmatpush1.bf16.msra.mxu0 0
        %323 = vmatprep.subr.bf16.mxu0 0
        %324 = vmatpush1.bf16.msra.mxu0 0
        %325 = vmatprep.subr.bf16.mxu0 0
        %326 = vmatpush1.bf16.msra.mxu0 0
        %327 = vmatprep.subr.bf16.mxu0 0
        %328 = vmatpush1.bf16.msra.mxu0 0
        %329 = vmatprep.subr.bf16.mxu0 0
        %330 = vmatpush1.bf16.msra.mxu0 0
        %331 = vmatprep.subr.bf16.mxu0 0
        %332 = vmatpush1.bf16.msra.mxu0 0
        %333 = vmatprep.subr.bf16.mxu0 0
        %334 = vmatpush1.bf16.msra.mxu0 0
        %335 = vmatprep.subr.bf16.mxu0 0
        %336 = vmatpush1.bf16.msra.mxu0 0
        %337 = vmatprep.mubr.bf16.mxu0 0
        %338 = vmatmul.mubr.bf16.gmra.mrb[0].mxu0 %v303
        %v339 = vpop.f32.mrb[0].mxu0
        %v340 = vadd.f32 0.0, %v339
        %v341 = vpop.f32.mrb[0].mxu0
        %v342 = vpop.f32.mrb[0].mxu0
        %v343 = vpop.f32.mrb[0].mxu0
        %344 = vdwg.mxu0
        %s345 = scalar_lea.vmem [#allocation6], 16
        %v346 = vld [vmem:[%s345] sm:$0xf]
        %v347 = vld [vmem:[%s345 + $0x4] sm:$0xf]
        %v348 = vld [vmem:[%s345 + $0x8] sm:$0xf]
        %v349 = vld [vmem:[%s345 + $0xc] sm:$0xf]
        %v354 = vunpack.c.l.b16 %v346
        %v355 = vunpack.c.l.b16 %v347
        %v356 = vunpack.c.l.b16 %v348
        %v357 = vunpack.c.l.b16 %v349
        %v358 = vpack.c.b16 %v355, %v354
        %v359 = vpack.c.b16 %v357, %v356
        %362 = vmatprep.subr.bf16.mxu0 0
        %363 = vmatpush1.bf16.msra.mxu0 %v358
        %364 = vmatprep.subr.bf16.mxu0 0
        %365 = vmatpush1.bf16.msra.mxu0 %v359
        %366 = vmatprep.subr.bf16.mxu0 0
        %367 = vmatpush1.bf16.msra.mxu0 0
        %368 = vmatprep.subr.bf16.mxu0 0
        %369 = vmatpush1.bf16.msra.mxu0 0
        %370 = vmatprep.subr.bf16.mxu0 0
        %371 = vmatpush1.bf16.msra.mxu0 0
        %372 = vmatprep.subr.bf16.mxu0 0
        %373 = vmatpush1.bf16.msra.mxu0 0
        %374 = vmatprep.subr.bf16.mxu0 0
        %375 = vmatpush1.bf16.msra.mxu0 0
        %376 = vmatprep.subr.bf16.mxu0 0
        %377 = vmatpush1.bf16.msra.mxu0 0
        %378 = vmatprep.subr.bf16.mxu0 0
        %379 = vmatpush1.bf16.msra.mxu0 0
        %380 = vmatprep.subr.bf16.mxu0 0
        %381 = vmatpush1.bf16.msra.mxu0 0
        %382 = vmatprep.subr.bf16.mxu0 0
        %383 = vmatpush1.bf16.msra.mxu0 0
        %384 = vmatprep.subr.bf16.mxu0 0
        %385 = vmatpush1.bf16.msra.mxu0 0
        %386 = vmatprep.subr.bf16.mxu0 0
        %387 = vmatpush1.bf16.msra.mxu0 0
        %388 = vmatprep.subr.bf16.mxu0 0
        %389 = vmatpush1.bf16.msra.mxu0 0
        %390 = vmatprep.subr.bf16.mxu0 0
        %391 = vmatpush1.bf16.msra.mxu0 0
        %392 = vmatprep.subr.bf16.mxu0 0
        %393 = vmatpush1.bf16.msra.mxu0 0
        %394 = vmatprep.mubr.bf16.mxu0 0
        %395 = vmatmul.mubr.bf16.gmra.mrb[0].mxu0 %v303
        %v396 = vpop.f32.mrb[0].mxu0
        %v397 = vadd.f32 0.0, %v396
        %v398 = vpop.f32.mrb[0].mxu0
        %v399 = vpop.f32.mrb[0].mxu0
        %v400 = vpop.f32.mrb[0].mxu0
        %401 = vdwg.mxu0
        %s402 = scalar_lea.vmem [#allocation6], 32
        %v403 = vld [vmem:[%s402] sm:$0xf]
        %v404 = vld [vmem:[%s402 + $0x4] sm:$0xf]
        %v405 = vld [vmem:[%s402 + $0x8] sm:$0xf]
        %v406 = vld [vmem:[%s402 + $0xc] sm:$0xf]
        %v411 = vunpack.c.l.b16 %v403
        %v412 = vunpack.c.l.b16 %v404
        %v413 = vunpack.c.l.b16 %v405
        %v414 = vunpack.c.l.b16 %v406
        %v415 = vpack.c.b16 %v412, %v411
        %v416 = vpack.c.b16 %v414, %v413
        %419 = vmatprep.subr.bf16.mxu0 0
        %420 = vmatpush1.bf16.msra.mxu0 %v415
        %421 = vmatprep.subr.bf16.mxu0 0
        %422 = vmatpush1.bf16.msra.mxu0 %v416
        %423 = vmatprep.subr.bf16.mxu0 0
        %424 = vmatpush1.bf16.msra.mxu0 0
        %425 = vmatprep.subr.bf16.mxu0 0
        %426 = vmatpush1.bf16.msra.mxu0 0
        %427 = vmatprep.subr.bf16.mxu0 0
        %428 = vmatpush1.bf16.msra.mxu0 0
        %429 = vmatprep.subr.bf16.mxu0 0
        %430 = vmatpush1.bf16.msra.mxu0 0
        %431 = vmatprep.subr.bf16.mxu0 0
        %432 = vmatpush1.bf16.msra.mxu0 0
        %433 = vmatprep.subr.bf16.mxu0 0
        %434 = vmatpush1.bf16.msra.mxu0 0
        %435 = vmatprep.subr.bf16.mxu0 0
        %436 = vmatpush1.bf16.msra.mxu0 0
        %437 = vmatprep.subr.bf16.mxu0 0
        %438 = vmatpush1.bf16.msra.mxu0 0
        %439 = vmatprep.subr.bf16.mxu0 0
        %440 = vmatpush1.bf16.msra.mxu0 0
        %441 = vmatprep.subr.bf16.mxu0 0
        %442 = vmatpush1.bf16.msra.mxu0 0
        %443 = vmatprep.subr.bf16.mxu0 0
        %444 = vmatpush1.bf16.msra.mxu0 0
        %445 = vmatprep.subr.bf16.mxu0 0
        %446 = vmatpush1.bf16.msra.mxu0 0
        %447 = vmatprep.subr.bf16.mxu0 0
        %448 = vmatpush1.bf16.msra.mxu0 0
        %449 = vmatprep.subr.bf16.mxu0 0
        %450 = vmatpush1.bf16.msra.mxu0 0
        %451 = vmatprep.mubr.bf16.mxu0 0
        %452 = vmatmul.mubr.bf16.gmra.mrb[0].mxu0 %v303
        %v453 = vpop.f32.mrb[0].mxu0
        %v454 = vadd.f32 0.0, %v453
        %v455 = vpop.f32.mrb[0].mxu0
        %v456 = vpop.f32.mrb[0].mxu0
        %v457 = vpop.f32.mrb[0].mxu0
        %458 = vdwg.mxu0
        %v459 = vpack.c.bf16 %v340, %v340
        %v460 = vpack.c.bf16 %v397, %v397
        %v461 = vpack.c.bf16 %v454, %v454
        %v462 = vld [vmem:[%s282] sm:$0x1]
        %v464 = vlaneseq
        %v465 = vshrl.u32 %v464, 7
        %v466 = vsub.s32 0, %v465
        %v467 = vrot.slane %v462, %v466
        %vm469 = vcmask 31744
        %v471 = vsel %vm469, %v459, 0
        %v474 = vsel %vm469, %v460, 0
        %476 = vmatprep.subr.bf16.mxu0 0
        %477 = vmatpush1.bf16.xpose.msra.mxu0 %v474
        %478 = vmatprep.subr.bf16.mxu0 0
        %479 = vmatpush1.bf16.xpose.msra.mxu0 0
        %480 = vmatprep.subr.bf16.mxu0 0
        %481 = vmatpush1.bf16.xpose.msra.mxu0 0
        %482 = vmatprep.subr.bf16.mxu0 0
        %483 = vmatpush1.bf16.xpose.msra.mxu0 0
        %484 = vmatprep.subr.bf16.mxu0 0
        %485 = vmatpush1.bf16.xpose.msra.mxu0 0
        %486 = vmatprep.subr.bf16.mxu0 0
        %487 = vmatpush1.bf16.xpose.msra.mxu0 0
        %488 = vmatprep.subr.bf16.mxu0 0
        %489 = vmatpush1.bf16.xpose.msra.mxu0 0
        %490 = vmatprep.subr.bf16.mxu0 0
        %491 = vmatpush1.bf16.xpose.msra.mxu0 0
        %492 = vmatprep.subr.bf16.mxu0 0
        %493 = vmatpush1.bf16.xpose.msra.mxu0 0
        %494 = vmatprep.subr.bf16.mxu0 0
        %495 = vmatpush1.bf16.xpose.msra.mxu0 0
        %496 = vmatprep.subr.bf16.mxu0 0
        %497 = vmatpush1.bf16.xpose.msra.mxu0 0
        %498 = vmatprep.subr.bf16.mxu0 0
        %499 = vmatpush1.bf16.xpose.msra.mxu0 0
        %500 = vmatprep.subr.bf16.mxu0 0
        %501 = vmatpush1.bf16.xpose.msra.mxu0 0
        %502 = vmatprep.subr.bf16.mxu0 0
        %503 = vmatpush1.bf16.xpose.msra.mxu0 0
        %504 = vmatprep.subr.bf16.mxu0 0
        %505 = vmatpush1.bf16.xpose.msra.mxu0 0
        %506 = vmatprep.subr.bf16.mxu0 0
        %507 = vmatpush1.bf16.xpose.msra.mxu0 0
        %508 = vmatprep.mubr.bf16.mxu0 0
        %509 = vmatmul.mubr.bf16.gmra.mrb[0].mxu0 %v471
        %v510 = vpop.f32.mrb[0].mxu0
        %v511 = vadd.f32 %v467, %v510
        %v512 = vpop.f32.mrb[0].mxu0
        %v513 = vpop.f32.mrb[0].mxu0
        %v514 = vpop.f32.mrb[0].mxu0
        %515 = vdwg.mxu0
        %vm516 = vcmask 64512
        %v517 = vsel %vm516, %v511, -inf
        %518 = vmax.xlane.f32.xlu0 %v517
        %v519 = vpop.xlane.xlu0 %518
        %v520 = vsub.f32 %v511, %v519
        %v521 = vmul.f32 %v520, 1.442695
        %v522 = vpow.pop %v521
        %v523 = vsel %vm516, %v522, 0.0
        %524 = vadd.xlane.f32.xlu0 %v523
        %v525 = vpop.xlane.xlu0 %524
        %v526 = vrcp.pop %v525
        %v527 = vmul.f32 %v522, %v526
        %v528 = vpack.c.bf16 %v527, %v527
        %v530 = vsel %vm516, %v528, 0
        %vm532 = vcmask 1043456
        %v534 = vsel %vm532, %v461, 0
        %536 = vmatprep.subr.bf16.mxu0 0
        %537 = vmatpush1.bf16.msra.mxu0 %v534
        %538 = vmatprep.subr.bf16.mxu0 0
        %539 = vmatpush1.bf16.msra.mxu0 0
        %540 = vmatprep.subr.bf16.mxu0 0
        %541 = vmatpush1.bf16.msra.mxu0 0
        %542 = vmatprep.subr.bf16.mxu0 0
        %543 = vmatpush1.bf16.msra.mxu0 0
        %544 = vmatprep.subr.bf16.mxu0 0
        %545 = vmatpush1.bf16.msra.mxu0 0
        %546 = vmatprep.subr.bf16.mxu0 0
        %547 = vmatpush1.bf16.msra.mxu0 0
        %548 = vmatprep.subr.bf16.mxu0 0
        %549 = vmatpush1.bf16.msra.mxu0 0
        %550 = vmatprep.subr.bf16.mxu0 0
        %551 = vmatpush1.bf16.msra.mxu0 0
        %552 = vmatprep.subr.bf16.mxu0 0
        %553 = vmatpush1.bf16.msra.mxu0 0
        %554 = vmatprep.subr.bf16.mxu0 0
        %555 = vmatpush1.bf16.msra.mxu0 0
        %556 = vmatprep.subr.bf16.mxu0 0
        %557 = vmatpush1.bf16.msra.mxu0 0
        %558 = vmatprep.subr.bf16.mxu0 0
        %559 = vmatpush1.bf16.msra.mxu0 0
        %560 = vmatprep.subr.bf16.mxu0 0
        %561 = vmatpush1.bf16.msra.mxu0 0
        %562 = vmatprep.subr.bf16.mxu0 0
        %563 = vmatpush1.bf16.msra.mxu0 0
        %564 = vmatprep.subr.bf16.mxu0 0
        %565 = vmatpush1.bf16.msra.mxu0 0
        %566 = vmatprep.subr.bf16.mxu0 0
        %567 = vmatpush1.bf16.msra.mxu0 0
        %568 = vmatprep.mubr.bf16.mxu0 0
        %569 = vmatmul.mubr.bf16.gmra.mrb[0].mxu0 %v530
        %v570 = vpop.f32.mrb[0].mxu0
        %v571 = vadd.f32 0.0, %v570
        %v572 = vpop.f32.mrb[0].mxu0
        %v573 = vpop.f32.mrb[0].mxu0
        %v574 = vpop.f32.mrb[0].mxu0
        %575 = vdwg.mxu0
        %v576 = vpack.c.bf16 %v571, %v571
        %vm577 = vcmask 27648
        %578 = vst.msk [vmem:[#allocation2] sm:$0xf] %vm577, %v576
        %580 = vrot.lane.b32.xlu0 %v459, 124
        %v581 = vpop.permute.xlu0 %580
        %583 = vrot.lane.b32.xlu0 %v460, 124
        %v584 = vpop.permute.xlu0 %583
        %v586 = vsel %vm469, %v581, 0
        %v589 = vsel %vm469, %v584, 0
        %591 = vmatprep.subr.bf16.mxu0 0
        %592 = vmatpush1.bf16.xpose.msra.mxu0 %v589
        %593 = vmatprep.subr.bf16.mxu0 0
        %594 = vmatpush1.bf16.xpose.msra.mxu0 0
        %595 = vmatprep.subr.bf16.mxu0 0
        %596 = vmatpush1.bf16.xpose.msra.mxu0 0
        %597 = vmatprep.subr.bf16.mxu0 0
        %598 = vmatpush1.bf16.xpose.msra.mxu0 0
        %599 = vmatprep.subr.bf16.mxu0 0
        %600 = vmatpush1.bf16.xpose.msra.mxu0 0
        %601 = vmatprep.subr.bf16.mxu0 0
        %602 = vmatpush1.bf16.xpose.msra.mxu0 0
        %603 = vmatprep.subr.bf16.mxu0 0
        %604 = vmatpush1.bf16.xpose.msra.mxu0 0
        %605 = vmatprep.subr.bf16.mxu0 0
        %606 = vmatpush1.bf16.xpose.msra.mxu0 0
        %607 = vmatprep.subr.bf16.mxu0 0
        %608 = vmatpush1.bf16.xpose.msra.mxu0 0
        %609 = vmatprep.subr.bf16.mxu0 0
        %610 = vmatpush1.bf16.xpose.msra.mxu0 0
        %611 = vmatprep.subr.bf16.mxu0 0
        %612 = vmatpush1.bf16.xpose.msra.mxu0 0
        %613 = vmatprep.subr.bf16.mxu0 0
        %614 = vmatpush1.bf16.xpose.msra.mxu0 0
        %615 = vmatprep.subr.bf16.mxu0 0
        %616 = vmatpush1.bf16.xpose.msra.mxu0 0
        %617 = vmatprep.subr.bf16.mxu0 0
        %618 = vmatpush1.bf16.xpose.msra.mxu0 0
        %619 = vmatprep.subr.bf16.mxu0 0
        %620 = vmatpush1.bf16.xpose.msra.mxu0 0
        %621 = vmatprep.subr.bf16.mxu0 0
        %622 = vmatpush1.bf16.xpose.msra.mxu0 0
        %623 = vmatprep.mubr.bf16.mxu0 0
        %624 = vmatmul.mubr.bf16.gmra.mrb[0].mxu0 %v586
        %v625 = vpop.f32.mrb[0].mxu0
        %v626 = vadd.f32 %v467, %v625
        %v627 = vpop.f32.mrb[0].mxu0
        %v628 = vpop.f32.mrb[0].mxu0
        %v629 = vpop.f32.mrb[0].mxu0
        %630 = vdwg.mxu0
        %v631 = vsel %vm516, %v626, -inf
        %632 = vmax.xlane.f32.xlu0 %v631
        %v633 = vpop.xlane.xlu0 %632
        %v634 = vsub.f32 %v626, %v633
        %v635 = vmul.f32 %v634, 1.442695
        %v636 = vpow.pop %v635
        %v637 = vsel %vm516, %v636, 0.0
        %638 = vadd.xlane.f32.xlu0 %v637
        %v639 = vpop.xlane.xlu0 %638
        %v640 = vrcp.pop %v639
        %v641 = vmul.f32 %v636, %v640
        %v642 = vpack.c.bf16 %v641, %v641
        %644 = vrot.lane.b32.xlu0 %v461, 124
        %v645 = vpop.permute.xlu0 %644
        %v647 = vsel %vm516, %v642, 0
        %v650 = vsel %vm532, %v645, 0
        %652 = vmatprep.subr.bf16.mxu0 0
        %653 = vmatpush1.bf16.msra.mxu0 %v650
        %654 = vmatprep.subr.bf16.mxu0 0
        %655 = vmatpush1.bf16.msra.mxu0 0
        %656 = vmatprep.subr.bf16.mxu0 0
        %657 = vmatpush1.bf16.msra.mxu0 0
        %658 = vmatprep.subr.bf16.mxu0 0
        %659 = vmatpush1.bf16.msra.mxu0 0
        %660 = vmatprep.subr.bf16.mxu0 0
        %661 = vmatpush1.bf16.msra.mxu0 0
        %662 = vmatprep.subr.bf16.mxu0 0
        %663 = vmatpush1.bf16.msra.mxu0 0
        %664 = vmatprep.subr.bf16.mxu0 0
        %665 = vmatpush1.bf16.msra.mxu0 0
        %666 = vmatprep.subr.bf16.mxu0 0
        %667 = vmatpush1.bf16.msra.mxu0 0
        %668 = vmatprep.subr.bf16.mxu0 0
        %669 = vmatpush1.bf16.msra.mxu0 0
        %670 = vmatprep.subr.bf16.mxu0 0
        %671 = vmatpush1.bf16.msra.mxu0 0
        %672 = vmatprep.subr.bf16.mxu0 0
        %673 = vmatpush1.bf16.msra.mxu0 0
        %674 = vmatprep.subr.bf16.mxu0 0
        %675 = vmatpush1.bf16.msra.mxu0 0
        %676 = vmatprep.subr.bf16.mxu0 0
        %677 = vmatpush1.bf16.msra.mxu0 0
        %678 = vmatprep.subr.bf16.mxu0 0
        %679 = vmatpush1.bf16.msra.mxu0 0
        %680 = vmatprep.subr.bf16.mxu0 0
        %681 = vmatpush1.bf16.msra.mxu0 0
        %682 = vmatprep.subr.bf16.mxu0 0
        %683 = vmatpush1.bf16.msra.mxu0 0
        %684 = vmatprep.mubr.bf16.mxu0 0
        %685 = vmatmul.mubr.bf16.gmra.mrb[0].mxu0 %v647
        %v686 = vpop.f32.mrb[0].mxu0
        %v687 = vadd.f32 0.0, %v686
        %v688 = vpop.f32.mrb[0].mxu0
        %v689 = vpop.f32.mrb[0].mxu0
        %v690 = vpop.f32.mrb[0].mxu0
        %691 = vdwg.mxu0
        %v692 = vpack.c.bf16 %v687, %v687
        %v694 = vunpack.c.l.b16 %v692
        %v695 = vpack.c.b16 %v694, %v694
        %696 = vrot.lane.b32.xlu0 %v695, 4
        %v697 = vpop.permute.xlu0 %696
        %vm699 = vcmask 60448
        %700 = vst.msk [vmem:[#allocation2] sm:$0xf] %vm699, %v697
        %701 = vrot.lane.b32.xlu0 %v459, 120
        %v702 = vpop.permute.xlu0 %701
        %703 = vrot.lane.b32.xlu0 %v460, 120
        %v704 = vpop.permute.xlu0 %703
        %v706 = vsel %vm469, %v702, 0
        %v709 = vsel %vm469, %v704, 0
        %711 = vmatprep.subr.bf16.mxu0 0
        %712 = vmatpush1.bf16.xpose.msra.mxu0 %v709
        %713 = vmatprep.subr.bf16.mxu0 0
        %714 = vmatpush1.bf16.xpose.msra.mxu0 0
        %715 = vmatprep.subr.bf16.mxu0 0
        %716 = vmatpush1.bf16.xpose.msra.mxu0 0
        %717 = vmatprep.subr.bf16.mxu0 0
        %718 = vmatpush1.bf16.xpose.msra.mxu0 0
        %719 = vmatprep.subr.bf16.mxu0 0
        %720 = vmatpush1.bf16.xpose.msra.mxu0 0
        %721 = vmatprep.subr.bf16.mxu0 0
        %722 = vmatpush1.bf16.xpose.msra.mxu0 0
        %723 = vmatprep.subr.bf16.mxu0 0
        %724 = vmatpush1.bf16.xpose.msra.mxu0 0
        %725 = vmatprep.subr.bf16.mxu0 0
        %726 = vmatpush1.bf16.xpose.msra.mxu0 0
        %727 = vmatprep.subr.bf16.mxu0 0
        %728 = vmatpush1.bf16.xpose.msra.mxu0 0
        %729 = vmatprep.subr.bf16.mxu0 0
        %730 = vmatpush1.bf16.xpose.msra.mxu0 0
        %731 = vmatprep.subr.bf16.mxu0 0
        %732 = vmatpush1.bf16.xpose.msra.mxu0 0
        %733 = vmatprep.subr.bf16.mxu0 0
        %734 = vmatpush1.bf16.xpose.msra.mxu0 0
        %735 = vmatprep.subr.bf16.mxu0 0
        %736 = vmatpush1.bf16.xpose.msra.mxu0 0
        %737 = vmatprep.subr.bf16.mxu0 0
        %738 = vmatpush1.bf16.xpose.msra.mxu0 0
        %739 = vmatprep.subr.bf16.mxu0 0
        %740 = vmatpush1.bf16.xpose.msra.mxu0 0
        %741 = vmatprep.subr.bf16.mxu0 0
        %742 = vmatpush1.bf16.xpose.msra.mxu0 0
        %743 = vmatprep.mubr.bf16.mxu0 0
        %744 = vmatmul.mubr.bf16.gmra.mrb[0].mxu0 %v706
        %v745 = vpop.f32.mrb[0].mxu0
        %v746 = vadd.f32 %v467, %v745
        %v747 = vpop.f32.mrb[0].mxu0
        %v748 = vpop.f32.mrb[0].mxu0
        %v749 = vpop.f32.mrb[0].mxu0
        %750 = vdwg.mxu0
        %v751 = vsel %vm516, %v746, -inf
        %752 = vmax.xlane.f32.xlu0 %v751
        %v753 = vpop.xlane.xlu0 %752
        %v754 = vsub.f32 %v746, %v753
        %v755 = vmul.f32 %v754, 1.442695
        %v756 = vpow.pop %v755
        %v757 = vsel %vm516, %v756, 0.0
        %758 = vadd.xlane.f32.xlu0 %v757
        %v759 = vpop.xlane.xlu0 %758
        %v760 = vrcp.pop %v759
        %v761 = vmul.f32 %v756, %v760
        %v762 = vpack.c.bf16 %v761, %v761
        %763 = vrot.lane.b32.xlu0 %v461, 120
        %v764 = vpop.permute.xlu0 %763
        %v766 = vsel %vm516, %v762, 0
        %v769 = vsel %vm532, %v764, 0
        %771 = vmatprep.subr.bf16.mxu0 0
        %772 = vmatpush1.bf16.msra.mxu0 %v769
        %773 = vmatprep.subr.bf16.mxu0 0
        %774 = vmatpush1.bf16.msra.mxu0 0
        %775 = vmatprep.subr.bf16.mxu0 0
        %776 = vmatpush1.bf16.msra.mxu0 0
        %777 = vmatprep.subr.bf16.mxu0 0
        %778 = vmatpush1.bf16.msra.mxu0 0
        %779 = vmatprep.subr.bf16.mxu0 0
        %780 = vmatpush1.bf16.msra.mxu0 0
        %781 = vmatprep.subr.bf16.mxu0 0
        %782 = vmatpush1.bf16.msra.mxu0 0
        %783 = vmatprep.subr.bf16.mxu0 0
        %784 = vmatpush1.bf16.msra.mxu0 0
        %785 = vmatprep.subr.bf16.mxu0 0
        %786 = vmatpush1.bf16.msra.mxu0 0
        %787 = vmatprep.subr.bf16.mxu0 0
        %788 = vmatpush1.bf16.msra.mxu0 0
        %789 = vmatprep.subr.bf16.mxu0 0
        %790 = vmatpush1.bf16.msra.mxu0 0
        %791 = vmatprep.subr.bf16.mxu0 0
        %792 = vmatpush1.bf16.msra.mxu0 0
        %793 = vmatprep.subr.bf16.mxu0 0
        %794 = vmatpush1.bf16.msra.mxu0 0
        %795 = vmatprep.subr.bf16.mxu0 0
        %796 = vmatpush1.bf16.msra.mxu0 0
        %797 = vmatprep.subr.bf16.mxu0 0
        %798 = vmatpush1.bf16.msra.mxu0 0
        %799 = vmatprep.subr.bf16.mxu0 0
        %800 = vmatpush1.bf16.msra.mxu0 0
        %801 = vmatprep.subr.bf16.mxu0 0
        %802 = vmatpush1.bf16.msra.mxu0 0
        %803 = vmatprep.mubr.bf16.mxu0 0
        %804 = vmatmul.mubr.bf16.gmra.mrb[0].mxu0 %v766
        %v805 = vpop.f32.mrb[0].mxu0
        %v806 = vadd.f32 0.0, %v805
        %v807 = vpop.f32.mrb[0].mxu0
        %v808 = vpop.f32.mrb[0].mxu0
        %v809 = vpop.f32.mrb[0].mxu0
        %810 = vdwg.mxu0
        %v811 = vpack.c.bf16 %v806, %v806
        %v813 = vunpack.c.l.b16 %v811
        %v814 = vpack.c.b16 %v813, %v813
        %815 = vrot.lane.b32.xlu0 %v814, 8
        %v816 = vpop.permute.xlu0 %815
        %vm818 = vcmask 93248
        %819 = vst.msk [vmem:[#allocation2] sm:$0xf] %vm818, %v816
        %820 = vrot.lane.b32.xlu0 %v459, 116
        %v821 = vpop.permute.xlu0 %820
        %822 = vrot.lane.b32.xlu0 %v460, 116
        %v823 = vpop.permute.xlu0 %822
        %v825 = vsel %vm469, %v821, 0
        %v828 = vsel %vm469, %v823, 0
        %830 = vmatprep.subr.bf16.mxu0 0
        %831 = vmatpush1.bf16.xpose.msra.mxu0 %v828
        %832 = vmatprep.subr.bf16.mxu0 0
        %833 = vmatpush1.bf16.xpose.msra.mxu0 0
        %834 = vmatprep.subr.bf16.mxu0 0
        %835 = vmatpush1.bf16.xpose.msra.mxu0 0
        %836 = vmatprep.subr.bf16.mxu0 0
        %837 = vmatpush1.bf16.xpose.msra.mxu0 0
        %838 = vmatprep.subr.bf16.mxu0 0
        %839 = vmatpush1.bf16.xpose.msra.mxu0 0
        %840 = vmatprep.subr.bf16.mxu0 0
        %841 = vmatpush1.bf16.xpose.msra.mxu0 0
        %842 = vmatprep.subr.bf16.mxu0 0
        %843 = vmatpush1.bf16.xpose.msra.mxu0 0
        %844 = vmatprep.subr.bf16.mxu0 0
        %845 = vmatpush1.bf16.xpose.msra.mxu0 0
        %846 = vmatprep.subr.bf16.mxu0 0
        %847 = vmatpush1.bf16.xpose.msra.mxu0 0
        %848 = vmatprep.subr.bf16.mxu0 0
        %849 = vmatpush1.bf16.xpose.msra.mxu0 0
        %850 = vmatprep.subr.bf16.mxu0 0
        %851 = vmatpush1.bf16.xpose.msra.mxu0 0
        %852 = vmatprep.subr.bf16.mxu0 0
        %853 = vmatpush1.bf16.xpose.msra.mxu0 0
        %854 = vmatprep.subr.bf16.mxu0 0
        %855 = vmatpush1.bf16.xpose.msra.mxu0 0
        %856 = vmatprep.subr.bf16.mxu0 0
        %857 = vmatpush1.bf16.xpose.msra.mxu0 0
        %858 = vmatprep.subr.bf16.mxu0 0
        %859 = vmatpush1.bf16.xpose.msra.mxu0 0
        %860 = vmatprep.subr.bf16.mxu0 0
        %861 = vmatpush1.bf16.xpose.msra.mxu0 0
        %862 = vmatprep.mubr.bf16.mxu0 0
        %863 = vmatmul.mubr.bf16.gmra.mrb[0].mxu0 %v825
        %v864 = vpop.f32.mrb[0].mxu0
        %v865 = vadd.f32 %v467, %v864
        %v866 = vpop.f32.mrb[0].mxu0
        %v867 = vpop.f32.mrb[0].mxu0
        %v868 = vpop.f32.mrb[0].mxu0
        %869 = vdwg.mxu0
        %v870 = vsel %vm516, %v865, -inf
        %871 = vmax.xlane.f32.xlu0 %v870
        %v872 = vpop.xlane.xlu0 %871
        %v873 = vsub.f32 %v865, %v872
        %v874 = vmul.f32 %v873, 1.442695
        %v875 = vpow.pop %v874
        %v876 = vsel %vm516, %v875, 0.0
        %877 = vadd.xlane.f32.xlu0 %v876
        %v878 = vpop.xlane.xlu0 %877
        %v879 = vrcp.pop %v878
        %v880 = vmul.f32 %v875, %v879
        %v881 = vpack.c.bf16 %v880, %v880
        %882 = vrot.lane.b32.xlu0 %v461, 116
        %v883 = vpop.permute.xlu0 %882
        %v885 = vsel %vm516, %v881, 0
        %v888 = vsel %vm532, %v883, 0
        %890 = vmatprep.subr.bf16.mxu0 0
        %891 = vmatpush1.bf16.msra.mxu0 %v888
        %892 = vmatprep.subr.bf16.mxu0 0
        %893 = vmatpush1.bf16.msra.mxu0 0
        %894 = vmatprep.subr.bf16.mxu0 0
        %895 = vmatpush1.bf16.msra.mxu0 0
        %896 = vmatprep.subr.bf16.mxu0 0
        %897 = vmatpush1.bf16.msra.mxu0 0
        %898 = vmatprep.subr.bf16.mxu0 0
        %899 = vmatpush1.bf16.msra.mxu0 0
        %900 = vmatprep.subr.bf16.mxu0 0
        %901 = vmatpush1.bf16.msra.mxu0 0
        %902 = vmatprep.subr.bf16.mxu0 0
        %903 = vmatpush1.bf16.msra.mxu0 0
        %904 = vmatprep.subr.bf16.mxu0 0
        %905 = vmatpush1.bf16.msra.mxu0 0
        %906 = vmatprep.subr.bf16.mxu0 0
        %907 = vmatpush1.bf16.msra.mxu0 0
        %908 = vmatprep.subr.bf16.mxu0 0
        %909 = vmatpush1.bf16.msra.mxu0 0
        %910 = vmatprep.subr.bf16.mxu0 0
        %911 = vmatpush1.bf16.msra.mxu0 0
        %912 = vmatprep.subr.bf16.mxu0 0
        %913 = vmatpush1.bf16.msra.mxu0 0
        %914 = vmatprep.subr.bf16.mxu0 0
        %915 = vmatpush1.bf16.msra.mxu0 0
        %916 = vmatprep.subr.bf16.mxu0 0
        %917 = vmatpush1.bf16.msra.mxu0 0
        %918 = vmatprep.subr.bf16.mxu0 0
        %919 = vmatpush1.bf16.msra.mxu0 0
        %920 = vmatprep.subr.bf16.mxu0 0
        %921 = vmatpush1.bf16.msra.mxu0 0
        %922 = vmatprep.mubr.bf16.mxu0 0
        %923 = vmatmul.mubr.bf16.gmra.mrb[0].mxu0 %v885
        %v924 = vpop.f32.mrb[0].mxu0
        %v925 = vadd.f32 0.0, %v924
        %v926 = vpop.f32.mrb[0].mxu0
        %v927 = vpop.f32.mrb[0].mxu0
        %v928 = vpop.f32.mrb[0].mxu0
        %929 = vdwg.mxu0
        %v930 = vpack.c.bf16 %v925, %v925
        %v932 = vunpack.c.l.b16 %v930
        %v933 = vpack.c.b16 %v932, %v932
        %934 = vrot.lane.b32.xlu0 %v933, 12
        %v935 = vpop.permute.xlu0 %934
        %vm937 = vcmask 126048
        %938 = vst.msk [vmem:[#allocation2] sm:$0xf] %vm937, %v935
        %939 = vrot.lane.b32.xlu0 %v459, 112
        %v940 = vpop.permute.xlu0 %939
        %941 = vrot.lane.b32.xlu0 %v460, 112
        %v942 = vpop.permute.xlu0 %941
        %v944 = vsel %vm469, %v940, 0
        %v947 = vsel %vm469, %v942, 0
        %949 = vmatprep.subr.bf16.mxu0 0
        %950 = vmatpush1.bf16.xpose.msra.mxu0 %v947
        %951 = vmatprep.subr.bf16.mxu0 0
        %952 = vmatpush1.bf16.xpose.msra.mxu0 0
        %953 = vmatprep.subr.bf16.mxu0 0
        %954 = vmatpush1.bf16.xpose.msra.mxu0 0
        %955 = vmatprep.subr.bf16.mxu0 0
        %956 = vmatpush1.bf16.xpose.msra.mxu0 0
        %957 = vmatprep.subr.bf16.mxu0 0
        %958 = vmatpush1.bf16.xpose.msra.mxu0 0
        %959 = vmatprep.subr.bf16.mxu0 0
        %960 = vmatpush1.bf16.xpose.msra.mxu0 0
        %961 = vmatprep.subr.bf16.mxu0 0
        %962 = vmatpush1.bf16.xpose.msra.mxu0 0
        %963 = vmatprep.subr.bf16.mxu0 0
        %964 = vmatpush1.bf16.xpose.msra.mxu0 0
        %965 = vmatprep.subr.bf16.mxu0 0
        %966 = vmatpush1.bf16.xpose.msra.mxu0 0
        %967 = vmatprep.subr.bf16.mxu0 0
        %968 = vmatpush1.bf16.xpose.msra.mxu0 0
        %969 = vmatprep.subr.bf16.mxu0 0
        %970 = vmatpush1.bf16.xpose.msra.mxu0 0
        %971 = vmatprep.subr.bf16.mxu0 0
        %972 = vmatpush1.bf16.xpose.msra.mxu0 0
        %973 = vmatprep.subr.bf16.mxu0 0
        %974 = vmatpush1.bf16.xpose.msra.mxu0 0
        %975 = vmatprep.subr.bf16.mxu0 0
        %976 = vmatpush1.bf16.xpose.msra.mxu0 0
        %977 = vmatprep.subr.bf16.mxu0 0
        %978 = vmatpush1.bf16.xpose.msra.mxu0 0
        %979 = vmatprep.subr.bf16.mxu0 0
        %980 = vmatpush1.bf16.xpose.msra.mxu0 0
        %981 = vmatprep.mubr.bf16.mxu0 0
        %982 = vmatmul.mubr.bf16.gmra.mrb[0].mxu0 %v944
        %v983 = vpop.f32.mrb[0].mxu0
        %v984 = vadd.f32 %v467, %v983
        %v985 = vpop.f32.mrb[0].mxu0
        %v986 = vpop.f32.mrb[0].mxu0
        %v987 = vpop.f32.mrb[0].mxu0
        %988 = vdwg.mxu0
        %v989 = vsel %vm516, %v984, -inf
        %990 = vmax.xlane.f32.xlu0 %v989
        %v991 = vpop.xlane.xlu0 %990
        %v992 = vsub.f32 %v984, %v991
        %v993 = vmul.f32 %v992, 1.442695
        %v994 = vpow.pop %v993
        %v995 = vsel %vm516, %v994, 0.0
        %996 = vadd.xlane.f32.xlu0 %v995
        %v997 = vpop.xlane.xlu0 %996
        %v998 = vrcp.pop %v997
        %v999 = vmul.f32 %v994, %v998
        %v1000 = vpack.c.bf16 %v999, %v999
        %1001 = vrot.lane.b32.xlu0 %v461, 112
        %v1002 = vpop.permute.xlu0 %1001
        %v1004 = vsel %vm516, %v1000, 0
        %v1007 = vsel %vm532, %v1002, 0
        %1009 = vmatprep.subr.bf16.mxu0 0
        %1010 = vmatpush1.bf16.msra.mxu0 %v1007
        %1011 = vmatprep.subr.bf16.mxu0 0
        %1012 = vmatpush1.bf16.msra.mxu0 0
        %1013 = vmatprep.subr.bf16.mxu0 0
        %1014 = vmatpush1.bf16.msra.mxu0 0
        %1015 = vmatprep.subr.bf16.mxu0 0
        %1016 = vmatpush1.bf16.msra.mxu0 0
        %1017 = vmatprep.subr.bf16.mxu0 0
        %1018 = vmatpush1.bf16.msra.mxu0 0
        %1019 = vmatprep.subr.bf16.mxu0 0
        %1020 = vmatpush1.bf16.msra.mxu0 0
        %1021 = vmatprep.subr.bf16.mxu0 0
        %1022 = vmatpush1.bf16.msra.mxu0 0
        %1023 = vmatprep.subr.bf16.mxu0 0
        %1024 = vmatpush1.bf16.msra.mxu0 0
        %1025 = vmatprep.subr.bf16.mxu0 0
        %1026 = vmatpush1.bf16.msra.mxu0 0
        %1027 = vmatprep.subr.bf16.mxu0 0
        %1028 = vmatpush1.bf16.msra.mxu0 0
        %1029 = vmatprep.subr.bf16.mxu0 0
        %1030 = vmatpush1.bf16.msra.mxu0 0
        %1031 = vmatprep.subr.bf16.mxu0 0
        %1032 = vmatpush1.bf16.msra.mxu0 0
        %1033 = vmatprep.subr.bf16.mxu0 0
        %1034 = vmatpush1.bf16.msra.mxu0 0
        %1035 = vmatprep.subr.bf16.mxu0 0
        %1036 = vmatpush1.bf16.msra.mxu0 0
        %1037 = vmatprep.subr.bf16.mxu0 0
        %1038 = vmatpush1.bf16.msra.mxu0 0
        %1039 = vmatprep.subr.bf16.mxu0 0
        %1040 = vmatpush1.bf16.msra.mxu0 0
        %1041 = vmatprep.mubr.bf16.mxu0 0
        %1042 = vmatmul.mubr.bf16.gmra.mrb[0].mxu0 %v1004
        %v1043 = vpop.f32.mrb[0].mxu0
        %v1044 = vadd.f32 0.0, %v1043
        %v1045 = vpop.f32.mrb[0].mxu0
        %v1046 = vpop.f32.mrb[0].mxu0
        %v1047 = vpop.f32.mrb[0].mxu0
        %1048 = vdwg.mxu0
        %v1049 = vpack.c.bf16 %v1044, %v1044
        %v1051 = vunpack.c.l.b16 %v1049
        %v1052 = vpack.c.b16 %v1051, %v1051
        %1053 = vrot.lane.b32.xlu0 %v1052, 16
        %v1054 = vpop.permute.xlu0 %1053
        %vm1056 = vcmask 158848
        %1057 = vst.msk [vmem:[#allocation2] sm:$0xf] %vm1056, %v1054
        %1058 = vrot.lane.b32.xlu0 %v459, 108
        %v1059 = vpop.permute.xlu0 %1058
        %1060 = vrot.lane.b32.xlu0 %v460, 108
        %v1061 = vpop.permute.xlu0 %1060
        %v1063 = vsel %vm469, %v1059, 0
        %v1066 = vsel %vm469, %v1061, 0
        %1068 = vmatprep.subr.bf16.mxu0 0
        %1069 = vmatpush1.bf16.xpose.msra.mxu0 %v1066
        %1070 = vmatprep.subr.bf16.mxu0 0
        %1071 = vmatpush1.bf16.xpose.msra.mxu0 0
        %1072 = vmatprep.subr.bf16.mxu0 0
        %1073 = vmatpush1.bf16.xpose.msra.mxu0 0
        %1074 = vmatprep.subr.bf16.mxu0 0
        %1075 = vmatpush1.bf16.xpose.msra.mxu0 0
        %1076 = vmatprep.subr.bf16.mxu0 0
        %1077 = vmatpush1.bf16.xpose.msra.mxu0 0
        %1078 = vmatprep.subr.bf16.mxu0 0
        %1079 = vmatpush1.bf16.xpose.msra.mxu0 0
        %1080 = vmatprep.subr.bf16.mxu0 0
        %1081 = vmatpush1.bf16.xpose.msra.mxu0 0
        %1082 = vmatprep.subr.bf16.mxu0 0
        %1083 = vmatpush1.bf16.xpose.msra.mxu0 0
        %1084 = vmatprep.subr.bf16.mxu0 0
        %1085 = vmatpush1.bf16.xpose.msra.mxu0 0
        %1086 = vmatprep.subr.bf16.mxu0 0
        %1087 = vmatpush1.bf16.xpose.msra.mxu0 0
        %1088 = vmatprep.subr.bf16.mxu0 0
        %1089 = vmatpush1.bf16.xpose.msra.mxu0 0
        %1090 = vmatprep.subr.bf16.mxu0 0
        %1091 = vmatpush1.bf16.xpose.msra.mxu0 0
        %1092 = vmatprep.subr.bf16.mxu0 0
        %1093 = vmatpush1.bf16.xpose.msra.mxu0 0
        %1094 = vmatprep.subr.bf16.mxu0 0
        %1095 = vmatpush1.bf16.xpose.msra.mxu0 0
        %1096 = vmatprep.subr.bf16.mxu0 0
        %1097 = vmatpush1.bf16.xpose.msra.mxu0 0
        %1098 = vmatprep.subr.bf16.mxu0 0
        %1099 = vmatpush1.bf16.xpose.msra.mxu0 0
        %1100 = vmatprep.mubr.bf16.mxu0 0
        %1101 = vmatmul.mubr.bf16.gmra.mrb[0].mxu0 %v1063
        %v1102 = vpop.f32.mrb[0].mxu0
        %v1103 = vadd.f32 %v467, %v1102
        %v1104 = vpop.f32.mrb[0].mxu0
        %v1105 = vpop.f32.mrb[0].mxu0
        %v1106 = vpop.f32.mrb[0].mxu0
        %1107 = vdwg.mxu0
        %v1108 = vsel %vm516, %v1103, -inf
        %1109 = vmax.xlane.f32.xlu0 %v1108
        %v1110 = vpop.xlane.xlu0 %1109
        %v1111 = vsub.f32 %v1103, %v1110
        %v1112 = vmul.f32 %v1111, 1.442695
        %v1113 = vpow.pop %v1112
        %v1114 = vsel %vm516, %v1113, 0.0
        %1115 = vadd.xlane.f32.xlu0 %v1114
        %v1116 = vpop.xlane.xlu0 %1115
        %v1117 = vrcp.pop %v1116
        %v1118 = vmul.f32 %v1113, %v1117
        %v1119 = vpack.c.bf16 %v1118, %v1118
        %1120 = vrot.lane.b32.xlu0 %v461, 108
        %v1121 = vpop.permute.xlu0 %1120
        %v1123 = vsel %vm516, %v1119, 0
        %v1126 = vsel %vm532, %v1121, 0
        %1128 = vmatprep.subr.bf16.mxu0 0
        %1129 = vmatpush1.bf16.msra.mxu0 %v1126
        %1130 = vmatprep.subr.bf16.mxu0 0
        %1131 = vmatpush1.bf16.msra.mxu0 0
        %1132 = vmatprep.subr.bf16.mxu0 0
        %1133 = vmatpush1.bf16.msra.mxu0 0
        %1134 = vmatprep.subr.bf16.mxu0 0
        %1135 = vmatpush1.bf16.msra.mxu0 0
        %1136 = vmatprep.subr.bf16.mxu0 0
        %1137 = vmatpush1.bf16.msra.mxu0 0
        %1138 = vmatprep.subr.bf16.mxu0 0
        %1139 = vmatpush1.bf16.msra.mxu0 0
        %1140 = vmatprep.subr.bf16.mxu0 0
        %1141 = vmatpush1.bf16.msra.mxu0 0
        %1142 = vmatprep.subr.bf16.mxu0 0
        %1143 = vmatpush1.bf16.msra.mxu0 0
        %1144 = vmatprep.subr.bf16.mxu0 0
        %1145 = vmatpush1.bf16.msra.mxu0 0
        %1146 = vmatprep.subr.bf16.mxu0 0
        %1147 = vmatpush1.bf16.msra.mxu0 0
        %1148 = vmatprep.subr.bf16.mxu0 0
        %1149 = vmatpush1.bf16.msra.mxu0 0
        %1150 = vmatprep.subr.bf16.mxu0 0
        %1151 = vmatpush1.bf16.msra.mxu0 0
        %1152 = vmatprep.subr.bf16.mxu0 0
        %1153 = vmatpush1.bf16.msra.mxu0 0
        %1154 = vmatprep.subr.bf16.mxu0 0
        %1155 = vmatpush1.bf16.msra.mxu0 0
        %1156 = vmatprep.subr.bf16.mxu0 0
        %1157 = vmatpush1.bf16.msra.mxu0 0
        %1158 = vmatprep.subr.bf16.mxu0 0
        %1159 = vmatpush1.bf16.msra.mxu0 0
        %1160 = vmatprep.mubr.bf16.mxu0 0
        %1161 = vmatmul.mubr.bf16.gmra.mrb[0].mxu0 %v1123
        %v1162 = vpop.f32.mrb[0].mxu0
        %v1163 = vadd.f32 0.0, %v1162
        %v1164 = vpop.f32.mrb[0].mxu0
        %v1165 = vpop.f32.mrb[0].mxu0
        %v1166 = vpop.f32.mrb[0].mxu0
        %1167 = vdwg.mxu0
        %v1168 = vpack.c.bf16 %v1163, %v1163
        %v1170 = vunpack.c.l.b16 %v1168
        %v1171 = vpack.c.b16 %v1170, %v1170
        %1172 = vrot.lane.b32.xlu0 %v1171, 20
        %v1173 = vpop.permute.xlu0 %1172
        %vm1175 = vcmask 191648
        %1176 = vst.msk [vmem:[#allocation2] sm:$0xf] %vm1175, %v1173
        %1177 = vrot.lane.b32.xlu0 %v459, 104
        %v1178 = vpop.permute.xlu0 %1177
        %1179 = vrot.lane.b32.xlu0 %v460, 104
        %v1180 = vpop.permute.xlu0 %1179
        %v1182 = vsel %vm469, %v1178, 0
        %v1185 = vsel %vm469, %v1180, 0
        %1187 = vmatprep.subr.bf16.mxu0 0
        %1188 = vmatpush1.bf16.xpose.msra.mxu0 %v1185
        %1189 = vmatprep.subr.bf16.mxu0 0
        %1190 = vmatpush1.bf16.xpose.msra.mxu0 0
        %1191 = vmatprep.subr.bf16.mxu0 0
        %1192 = vmatpush1.bf16.xpose.msra.mxu0 0
        %1193 = vmatprep.subr.bf16.mxu0 0
        %1194 = vmatpush1.bf16.xpose.msra.mxu0 0
        %1195 = vmatprep.subr.bf16.mxu0 0
        %1196 = vmatpush1.bf16.xpose.msra.mxu0 0
        %1197 = vmatprep.subr.bf16.mxu0 0
        %1198 = vmatpush1.bf16.xpose.msra.mxu0 0
        %1199 = vmatprep.subr.bf16.mxu0 0
        %1200 = vmatpush1.bf16.xpose.msra.mxu0 0
        %1201 = vmatprep.subr.bf16.mxu0 0
        %1202 = vmatpush1.bf16.xpose.msra.mxu0 0
        %1203 = vmatprep.subr.bf16.mxu0 0
        %1204 = vmatpush1.bf16.xpose.msra.mxu0 0
        %1205 = vmatprep.subr.bf16.mxu0 0
        %1206 = vmatpush1.bf16.xpose.msra.mxu0 0
        %1207 = vmatprep.subr.bf16.mxu0 0
        %1208 = vmatpush1.bf16.xpose.msra.mxu0 0
        %1209 = vmatprep.subr.bf16.mxu0 0
        %1210 = vmatpush1.bf16.xpose.msra.mxu0 0
        %1211 = vmatprep.subr.bf16.mxu0 0
        %1212 = vmatpush1.bf16.xpose.msra.mxu0 0
        %1213 = vmatprep.subr.bf16.mxu0 0
        %1214 = vmatpush1.bf16.xpose.msra.mxu0 0
        %1215 = vmatprep.subr.bf16.mxu0 0
        %1216 = vmatpush1.bf16.xpose.msra.mxu0 0
        %1217 = vmatprep.subr.bf16.mxu0 0
        %1218 = vmatpush1.bf16.xpose.msra.mxu0 0
        %1219 = vmatprep.mubr.bf16.mxu0 0
        %1220 = vmatmul.mubr.bf16.gmra.mrb[0].mxu0 %v1182
        %v1221 = vpop.f32.mrb[0].mxu0
        %v1222 = vadd.f32 %v467, %v1221
        %v1223 = vpop.f32.mrb[0].mxu0
        %v1224 = vpop.f32.mrb[0].mxu0
        %v1225 = vpop.f32.mrb[0].mxu0
        %1226 = vdwg.mxu0
        %v1227 = vsel %vm516, %v1222, -inf
        %1228 = vmax.xlane.f32.xlu0 %v1227
        %v1229 = vpop.xlane.xlu0 %1228
        %v1230 = vsub.f32 %v1222, %v1229
        %v1231 = vmul.f32 %v1230, 1.442695
        %v1232 = vpow.pop %v1231
        %v1233 = vsel %vm516, %v1232, 0.0
        %1234 = vadd.xlane.f32.xlu0 %v1233
        %v1235 = vpop.xlane.xlu0 %1234
        %v1236 = vrcp.pop %v1235
        %v1237 = vmul.f32 %v1232, %v1236
        %v1238 = vpack.c.bf16 %v1237, %v1237
        %1239 = vrot.lane.b32.xlu0 %v461, 104
        %v1240 = vpop.permute.xlu0 %1239
        %v1242 = vsel %vm516, %v1238, 0
        %v1245 = vsel %vm532, %v1240, 0
        %1247 = vmatprep.subr.bf16.mxu0 0
        %1248 = vmatpush1.bf16.msra.mxu0 %v1245
        %1249 = vmatprep.subr.bf16.mxu0 0
        %1250 = vmatpush1.bf16.msra.mxu0 0
        %1251 = vmatprep.subr.bf16.mxu0 0
        %1252 = vmatpush1.bf16.msra.mxu0 0
        %1253 = vmatprep.subr.bf16.mxu0 0
        %1254 = vmatpush1.bf16.msra.mxu0 0
        %1255 = vmatprep.subr.bf16.mxu0 0
        %1256 = vmatpush1.bf16.msra.mxu0 0
        %1257 = vmatprep.subr.bf16.mxu0 0
        %1258 = vmatpush1.bf16.msra.mxu0 0
        %1259 = vmatprep.subr.bf16.mxu0 0
        %1260 = vmatpush1.bf16.msra.mxu0 0
        %1261 = vmatprep.subr.bf16.mxu0 0
        %1262 = vmatpush1.bf16.msra.mxu0 0
        %1263 = vmatprep.subr.bf16.mxu0 0
        %1264 = vmatpush1.bf16.msra.mxu0 0
        %1265 = vmatprep.subr.bf16.mxu0 0
        %1266 = vmatpush1.bf16.msra.mxu0 0
        %1267 = vmatprep.subr.bf16.mxu0 0
        %1268 = vmatpush1.bf16.msra.mxu0 0
        %1269 = vmatprep.subr.bf16.mxu0 0
        %1270 = vmatpush1.bf16.msra.mxu0 0
        %1271 = vmatprep.subr.bf16.mxu0 0
        %1272 = vmatpush1.bf16.msra.mxu0 0
        %1273 = vmatprep.subr.bf16.mxu0 0
        %1274 = vmatpush1.bf16.msra.mxu0 0
        %1275 = vmatprep.subr.bf16.mxu0 0
        %1276 = vmatpush1.bf16.msra.mxu0 0
        %1277 = vmatprep.subr.bf16.mxu0 0
        %1278 = vmatpush1.bf16.msra.mxu0 0
        %1279 = vmatprep.mubr.bf16.mxu0 0
        %1280 = vmatmul.mubr.bf16.gmra.mrb[0].mxu0 %v1242
        %v1281 = vpop.f32.mrb[0].mxu0
        %v1282 = vadd.f32 0.0, %v1281
        %v1283 = vpop.f32.mrb[0].mxu0
        %v1284 = vpop.f32.mrb[0].mxu0
        %v1285 = vpop.f32.mrb[0].mxu0
        %1286 = vdwg.mxu0
        %v1287 = vpack.c.bf16 %v1282, %v1282
        %v1289 = vunpack.c.l.b16 %v1287
        %v1290 = vpack.c.b16 %v1289, %v1289
        %1291 = vrot.lane.b32.xlu0 %v1290, 24
        %v1292 = vpop.permute.xlu0 %1291
        %vm1294 = vcmask 224448
        %1295 = vst.msk [vmem:[#allocation2] sm:$0xf] %vm1294, %v1292
        %1296 = vrot.lane.b32.xlu0 %v459, 100
        %v1297 = vpop.permute.xlu0 %1296
        %1298 = vrot.lane.b32.xlu0 %v460, 100
        %v1299 = vpop.permute.xlu0 %1298
        %v1301 = vsel %vm469, %v1297, 0
        %v1304 = vsel %vm469, %v1299, 0
        %1306 = vmatprep.subr.bf16.mxu0 0
        %1307 = vmatpush1.bf16.xpose.msra.mxu0 %v1304
        %1308 = vmatprep.subr.bf16.mxu0 0
        %1309 = vmatpush1.bf16.xpose.msra.mxu0 0
        %1310 = vmatprep.subr.bf16.mxu0 0
        %1311 = vmatpush1.bf16.xpose.msra.mxu0 0
        %1312 = vmatprep.subr.bf16.mxu0 0
        %1313 = vmatpush1.bf16.xpose.msra.mxu0 0
        %1314 = vmatprep.subr.bf16.mxu0 0
        %1315 = vmatpush1.bf16.xpose.msra.mxu0 0
        %1316 = vmatprep.subr.bf16.mxu0 0
        %1317 = vmatpush1.bf16.xpose.msra.mxu0 0
        %1318 = vmatprep.subr.bf16.mxu0 0
        %1319 = vmatpush1.bf16.xpose.msra.mxu0 0
        %1320 = vmatprep.subr.bf16.mxu0 0
        %1321 = vmatpush1.bf16.xpose.msra.mxu0 0
        %1322 = vmatprep.subr.bf16.mxu0 0
        %1323 = vmatpush1.bf16.xpose.msra.mxu0 0
        %1324 = vmatprep.subr.bf16.mxu0 0
        %1325 = vmatpush1.bf16.xpose.msra.mxu0 0
        %1326 = vmatprep.subr.bf16.mxu0 0
        %1327 = vmatpush1.bf16.xpose.msra.mxu0 0
        %1328 = vmatprep.subr.bf16.mxu0 0
        %1329 = vmatpush1.bf16.xpose.msra.mxu0 0
        %1330 = vmatprep.subr.bf16.mxu0 0
        %1331 = vmatpush1.bf16.xpose.msra.mxu0 0
        %1332 = vmatprep.subr.bf16.mxu0 0
        %1333 = vmatpush1.bf16.xpose.msra.mxu0 0
        %1334 = vmatprep.subr.bf16.mxu0 0
        %1335 = vmatpush1.bf16.xpose.msra.mxu0 0
        %1336 = vmatprep.subr.bf16.mxu0 0
        %1337 = vmatpush1.bf16.xpose.msra.mxu0 0
        %1338 = vmatprep.mubr.bf16.mxu0 0
        %1339 = vmatmul.mubr.bf16.gmra.mrb[0].mxu0 %v1301
        %v1340 = vpop.f32.mrb[0].mxu0
        %v1341 = vadd.f32 %v467, %v1340
        %v1342 = vpop.f32.mrb[0].mxu0
        %v1343 = vpop.f32.mrb[0].mxu0
        %v1344 = vpop.f32.mrb[0].mxu0
        %1345 = vdwg.mxu0
        %v1346 = vsel %vm516, %v1341, -inf
        %1347 = vmax.xlane.f32.xlu0 %v1346
        %v1348 = vpop.xlane.xlu0 %1347
        %v1349 = vsub.f32 %v1341, %v1348
        %v1350 = vmul.f32 %v1349, 1.442695
        %v1351 = vpow.pop %v1350
        %v1352 = vsel %vm516, %v1351, 0.0
        %1353 = vadd.xlane.f32.xlu0 %v1352
        %v1354 = vpop.xlane.xlu0 %1353
        %v1355 = vrcp.pop %v1354
        %v1356 = vmul.f32 %v1351, %v1355
        %v1357 = vpack.c.bf16 %v1356, %v1356
        %1358 = vrot.lane.b32.xlu0 %v461, 100
        %v1359 = vpop.permute.xlu0 %1358
        %v1361 = vsel %vm516, %v1357, 0
        %v1364 = vsel %vm532, %v1359, 0
        %1366 = vmatprep.subr.bf16.mxu0 0
        %1367 = vmatpush1.bf16.msra.mxu0 %v1364
        %1368 = vmatprep.subr.bf16.mxu0 0
        %1369 = vmatpush1.bf16.msra.mxu0 0
        %1370 = vmatprep.subr.bf16.mxu0 0
        %1371 = vmatpush1.bf16.msra.mxu0 0
        %1372 = vmatprep.subr.bf16.mxu0 0
        %1373 = vmatpush1.bf16.msra.mxu0 0
        %1374 = vmatprep.subr.bf16.mxu0 0
        %1375 = vmatpush1.bf16.msra.mxu0 0
        %1376 = vmatprep.subr.bf16.mxu0 0
        %1377 = vmatpush1.bf16.msra.mxu0 0
        %1378 = vmatprep.subr.bf16.mxu0 0
        %1379 = vmatpush1.bf16.msra.mxu0 0
        %1380 = vmatprep.subr.bf16.mxu0 0
        %1381 = vmatpush1.bf16.msra.mxu0 0
        %1382 = vmatprep.subr.bf16.mxu0 0
        %1383 = vmatpush1.bf16.msra.mxu0 0
        %1384 = vmatprep.subr.bf16.mxu0 0
        %1385 = vmatpush1.bf16.msra.mxu0 0
        %1386 = vmatprep.subr.bf16.mxu0 0
        %1387 = vmatpush1.bf16.msra.mxu0 0
        %1388 = vmatprep.subr.bf16.mxu0 0
        %1389 = vmatpush1.bf16.msra.mxu0 0
        %1390 = vmatprep.subr.bf16.mxu0 0
        %1391 = vmatpush1.bf16.msra.mxu0 0
        %1392 = vmatprep.subr.bf16.mxu0 0
        %1393 = vmatpush1.bf16.msra.mxu0 0
        %1394 = vmatprep.subr.bf16.mxu0 0
        %1395 = vmatpush1.bf16.msra.mxu0 0
        %1396 = vmatprep.subr.bf16.mxu0 0
        %1397 = vmatpush1.bf16.msra.mxu0 0
        %1398 = vmatprep.mubr.bf16.mxu0 0
        %1399 = vmatmul.mubr.bf16.gmra.mrb[0].mxu0 %v1361
        %v1400 = vpop.f32.mrb[0].mxu0
        %v1401 = vadd.f32 0.0, %v1400
        %v1402 = vpop.f32.mrb[0].mxu0
        %v1403 = vpop.f32.mrb[0].mxu0
        %v1404 = vpop.f32.mrb[0].mxu0
        %1405 = vdwg.mxu0
        %v1406 = vpack.c.bf16 %v1401, %v1401
        %v1408 = vunpack.c.l.b16 %v1406
        %v1409 = vpack.c.b16 %v1408, %v1408
        %1410 = vrot.lane.b32.xlu0 %v1409, 28
        %v1411 = vpop.permute.xlu0 %1410
        %vm1413 = vcmask 257248
        %1414 = vst.msk [vmem:[#allocation2] sm:$0xf] %vm1413, %v1411
        %v1415 = vld [vmem:[#allocation2] sm:$0xf]
        %v1416 = vld [vmem:[#allocation8] sm:$0xf]
        %v1417 = vld [vmem:[#allocation8 + $0x4] sm:$0xf]
        %v1418 = vld [vmem:[#allocation8 + $0x8] sm:$0xf]
        %v1419 = vld [vmem:[#allocation8 + $0xc] sm:$0xf]
        %v1420 = vld [vmem:[%s4] sm:$0x1]
        %v1422 = vlaneseq
        %v1423 = vshrl.u32 %v1422, 7
        %v1424 = vsub.s32 0, %v1423
        %v1425 = vrot.slane %v1420, %v1424
        %v1431 = vunpack.c.l.b16 %v1416
        %v1432 = vunpack.c.l.b16 %v1417
        %v1433 = vunpack.c.l.b16 %v1418
        %v1434 = vunpack.c.l.b16 %v1419
        %v1435 = vpack.c.b16 %v1432, %v1431
        %v1436 = vpack.c.b16 %v1434, %v1433
        %v1440 = vsel %vm301, %v1415, 0
        %1442 = vmatprep.subr.bf16.mxu0 0
        %1443 = vmatpush1.bf16.msra.mxu0 %v1435
        %1444 = vmatprep.subr.bf16.mxu0 0
        %1445 = vmatpush1.bf16.msra.mxu0 %v1436
        %1446 = vmatprep.subr.bf16.mxu0 0
        %1447 = vmatpush1.bf16.msra.mxu0 0
        %1448 = vmatprep.subr.bf16.mxu0 0
        %1449 = vmatpush1.bf16.msra.mxu0 0
        %1450 = vmatprep.subr.bf16.mxu0 0
        %1451 = vmatpush1.bf16.msra.mxu0 0
        %1452 = vmatprep.subr.bf16.mxu0 0
        %1453 = vmatpush1.bf16.msra.mxu0 0
        %1454 = vmatprep.subr.bf16.mxu0 0
        %1455 = vmatpush1.bf16.msra.mxu0 0
        %1456 = vmatprep.subr.bf16.mxu0 0
        %1457 = vmatpush1.bf16.msra.mxu0 0
        %1458 = vmatprep.subr.bf16.mxu0 0
        %1459 = vmatpush1.bf16.msra.mxu0 0
        %1460 = vmatprep.subr.bf16.mxu0 0
        %1461 = vmatpush1.bf16.msra.mxu0 0
        %1462 = vmatprep.subr.bf16.mxu0 0
        %1463 = vmatpush1.bf16.msra.mxu0 0
        %1464 = vmatprep.subr.bf16.mxu0 0
        %1465 = vmatpush1.bf16.msra.mxu0 0
        %1466 = vmatprep.subr.bf16.mxu0 0
        %1467 = vmatpush1.bf16.msra.mxu0 0
        %1468 = vmatprep.subr.bf16.mxu0 0
        %1469 = vmatpush1.bf16.msra.mxu0 0
        %1470 = vmatprep.subr.bf16.mxu0 0
        %1471 = vmatpush1.bf16.msra.mxu0 0
        %1472 = vmatprep.subr.bf16.mxu0 0
        %1473 = vmatpush1.bf16.msra.mxu0 0
        %1474 = vmatprep.mubr.bf16.mxu0 0
        %1475 = vmatmul.mubr.bf16.gmra.mrb[0].mxu0 %v1440
        %v1476 = vpop.f32.mrb[0].mxu0
        %v1477 = vadd.f32 %v1425, %v1476
        %v1478 = vpop.f32.mrb[0].mxu0
        %v1479 = vpop.f32.mrb[0].mxu0
        %v1480 = vpop.f32.mrb[0].mxu0
        %1481 = vdwg.mxu0
        %1482 = vst.msk [vmem:[%s279] sm:$0xff] %vm301, %v1477
        %s1483 = sand.u32 %s146, 1
        %s1484 = scalar_lea.sflag [#allocation5], %s1483
        %s1485 = sand.u32 %s146, 1
        %s1486 = smul.addr %s1485, 8
        %s1487 = scalar_lea.vmem [#allocation9], %s1486
        // Predicated region
        $region53: #{tpu_custom_call.1} parent=39 // pred_check
          %p1488 = pneg %p156
        $region54: #{tpu_custom_call.1} parent=39 // pred_check_branch
          %1490 = sbr.rel (%p1488) target = $region56
        $region55: #{tpu_custom_call.1} parent=39 // pred_region
          %s1492 = ssub.s32 128, 128
          %1493 = vsyncadd %s1484, %s1492
          %s1494 = smul.addr %s23, 128
          %s1495 = scalar_lea.hbm %s5, %s1494
          %s1497 = sshll.u32 %s1487, 4
          %s1498 = int_to_ptr.vmem [resolvable:$true] %s1497
          %1500 = dma.vmem_to_hbm [thread:$0]  %s1498, 128, %s1495, %s1484
        $region56: #{tpu_custom_call.1} parent=39 // pred_fallthru
          _
      $region40: #{tpu_custom_call.1} parent=5 // pred_fallthru
        _
      %p1501 = scmp.le.s32.totalorder 2, %s18
      // Predicated region
      $region57: #{tpu_custom_call.1} parent=5 // pred_check
        %p1502 = pneg %p1501
      $region58: #{tpu_custom_call.1} parent=5 // pred_check_branch
        %1504 = sbr.rel (%p1502) target = $region60
      $region59: #{tpu_custom_call.1} parent=5 // pred_region
        %s1505 = ssub.s32 %s18, 2
        // Predicated region
        $region61: #{tpu_custom_call.1} parent=59 // pred_check
          %p1506 = pneg %p162
        $region62: #{tpu_custom_call.1} parent=59 // pred_check_branch
          %1508 = sbr.rel (%p1506) target = $region64
        $region63: #{tpu_custom_call.1} parent=59 // pred_region
          %s1509 = sand.u32 %s147, 1
          %s1510 = scalar_lea.sflag [#allocation5], %s1509
          %s1511 = sand.u32 %s147, 1
          %s1512 = smul.addr %s1511, 8
          %s1513 = scalar_lea.vmem [#allocation9], %s1512
          %1514 = dma.done %s1510, 128
        $region64: #{tpu_custom_call.1} parent=59 // pred_fallthru
          _
      $region60: #{tpu_custom_call.1} parent=5 // pred_fallthru
        _
    $region6: #{tpu_custom_call.1} parent=1 // loop_footer
      %s22 = sadd.s32 1, %s18
    $region7: #{tpu_custom_call.1} parent=1 // loop_footer_branch
      %17 = sbr.rel target = $region3
    $region8: #{tpu_custom_call.1} parent=1 // loop_exit
      _
    %1515 = vsyncpa [#allocation4], 1
    %s1516 = scalar_lea.sflag [#allocation4], 1
    %1517 = vsyncpa %s1516, 1
    %1518 = vsyncpa [#allocation7], 1
    %1519 = vsyncpa [#allocation5], 1
    %s1520 = scalar_lea.sflag [#allocation5], 1
    %1521 = vsyncpa %s1520, 1

</llo_original>
